<compile_context>
chip_gen: v6e
topology: v6e:2x2x1
jax: 0.10.0
libtpu: 0.0.40
codegen_flags: <defaults>
</compile_context>

<pallas_src>
import math

import numpy as np
import jax
import jax.numpy as jnp
from jax import lax
from jax.experimental import pallas as pl
from jax.experimental.pallas import tpu as pltpu

HIGH = jax.lax.Precision.HIGHEST   # only used by the pure-JAX reference


# ----------------------------- fused Pallas kernel ----------------------------
def _make_fused_kernel(B, S, Din, Dsq, window_sizes, pool_size):
    P = pool_size // 2
    K = pool_size
    N = B * S
    NL = len(window_sizes)
    # Finite sentinel instead of -inf.  Safe: with K == 2P and 1 <= P < S (asserted in
    # the wrapper) every pooling window contains at least one unmasked element, so the
    # sentinel can never leak into LayerNorm.
    NEG = -1e30

    def kernel(*refs):
        x_ref, enc_wt_ref, enc_b_ref = refs[:3]
        layer_refs = refs[3:3 + 2 * NL]
        out_wt_ref, out_b_ref, o_ref = refs[3 + 2 * NL:]

        xin = x_ref[...]                                         # (N, Din)

        # ---- encoder: h = x @ W_enc^T + b  (DEFAULT precision, f32 accumulation) ----
        h = jnp.dot(xin, enc_wt_ref[...],
                    preferred_element_type=jnp.float32) + enc_b_ref[...]

        # position-within-sequence for every row of the folded (B*S, D) layout
        row = lax.broadcasted_iota(jnp.int32, (N, Dsq), 0)
        t = row % S

        for li, W in enumerate(window_sizes):
            w_ref = layer_refs[2 * li]                           # (W*Dsq, Dsq)
            vec_ref = layer_refs[2 * li + 1]                     # (3, Dsq): bias, gamma, beta

            # ---- SlidingWindowLinear: im2col slab from causal shifts.  Shifts run on
            #      the XLU slot; the causal zero-pad is a mask, never an HBM tensor.
            blocks = []
            for w in range(W):
                d = W - 1 - w                                    # causal shift for tap w
                if d == 0:
                    blocks.append(h)
                else:
                    shifted = pltpu.roll(h, shift=d, axis=0)     # shifted[r] = h[r - d]
                    # mask rows where the roll wrapped across a batch boundary / padding
                    blocks.append(jnp.where(t >= d, shifted, 0.0))
            slab = jnp.concatenate(blocks, axis=-1)              # (N, W*Dsq)
            acc = jnp.dot(slab, w_ref[...],
                          preferred_element_type=jnp.float32) + vec_ref[0:1, :]
            # TODO(synk): nn.Dropout(p=0.05) treated as identity (eval mode); training RNG not reproduced.

            # ---- MaxPool1d branch (slice / permute / pool / re-pad dance; K == 2P) ----
            masked = jnp.where(t < S - P, acc, NEG)              # x[:, :-P], rest -> "-inf"
            pooled = jnp.full((N, Dsq), NEG, jnp.float32)
            for i in range(1, K + 1):                            # max over K positions preceding t
                rolled = pltpu.roll(masked, shift=i, axis=0)     # rolled[r] = masked[r - i]
                pooled = jnp.maximum(pooled, jnp.where(t >= i, rolled, NEG))
            x = jnp.where(t < P, 0.0, pooled)                    # prepend P zero rows per sequence

            # ---- LayerNorm over the feature axis (eps=1e-5, affine) ----
            mean = jnp.mean(x, axis=-1, keepdims=True)
            var = jnp.mean((x - mean) ** 2, axis=-1, keepdims=True)
            xn = (x - mean) * lax.rsqrt(var + 1e-5)
            xn = xn * vec_ref[1:2, :] + vec_ref[2:3, :]

            # ---- LeakyReLU(0.01) ----
            h = jnp.where(xn > 0, xn, 0.01 * xn)

        # ---- out_linear(dstack([h, x_input])) + residual: single K = Dsq+Din matmul ----
        cat = jnp.concatenate([h, xin], axis=-1)                 # (N, Dsq + Din)
        y = jnp.dot(cat, out_wt_ref[...], preferred_element_type=jnp.float32)
        o_ref[...] = (y + out_b_ref[...] + xin).astype(o_ref.dtype)

    return kernel


# ------------------------------ parameter prep --------------------------------
def prepare_params(params, window_sizes):
    """One-time layout prep (transposes / packing) so the forward has no per-call reshuffles."""
    Dsq = params["enc_w"].shape[0]
    layers = []
    for li, W in enumerate(window_sizes):
        w = params["sw_w"][li]                                   # (Dsq, Dsq*W), flat idx = d*W + w
        wflat = jnp.transpose(w.reshape(Dsq, Dsq, W), (2, 1, 0)).reshape(W * Dsq, Dsq)
        vec = jnp.stack([params["sw_b"][li], params["ln_g"][li], params["ln_b"][li]], axis=0)
        layers.append((wflat, vec))                              # (W*Dsq, Dsq), (3, Dsq)
    return {
        "enc_wt": params["enc_w"].T,                             # (Din, Dsq)
        "enc_b": params["enc_b"][None, :],                       # (1, Dsq)
        "out_wt": params["out_w"].T,                             # (Dsq+Din, Din)
        "out_b": params["out_b"][None, :],                       # (1, Din)
        "layers": layers,
    }


# --------------------------------- forward ------------------------------------
def stacked_sliding_window_forward(x_input, prep, window_sizes, pool_size):
    B, S, Din = x_input.shape
    Dsq = prep["enc_wt"].shape[1]
    P = pool_size // 2
    # Guards so the finite NEG sentinel in the kernel can never leak into LayerNorm.
    assert pool_size == 2 * P, "pool_size must be even to preserve sequence length"
    assert 1 <= P < S, "every pooling window must contain at least one valid element"
    N = B * S

    kernel = _make_fused_kernel(B, S, Din, Dsq, window_sizes, pool_size)

    flat_layer_args = []
    in_specs = [
        pl.BlockSpec((N, Din), lambda i: (0, 0)),                # x (folded batch)
        pl.BlockSpec((Din, Dsq), lambda i: (0, 0)),              # enc W^T
        pl.BlockSpec((1, Dsq), lambda i: (0, 0)),                # enc bias
    ]
    for (wflat, vec), W in zip(prep["layers"], window_sizes):
        flat_layer_args += [wflat, vec]
        in_specs += [
            pl.BlockSpec((W * Dsq, Dsq), lambda i: (0, 0)),      # fused sliding-window weight
            pl.BlockSpec((3, Dsq), lambda i: (0, 0)),            # packed bias/gamma/beta
        ]
    in_specs += [
        pl.BlockSpec((Dsq + Din, Din), lambda i: (0, 0)),        # out W^T (concat K)
        pl.BlockSpec((1, Din), lambda i: (0, 0)),                # out bias
    ]

    out = pl.pallas_call(
        kernel,
        out_shape=jax.ShapeDtypeStruct((N, Din), jnp.float32),
        grid=(1,),
        in_specs=in_specs,
        out_specs=pl.BlockSpec((N, Din), lambda i: (0, 0)),
        compiler_params=pltpu.CompilerParams(dimension_semantics=("arbitrary",)),
    )(x_input.reshape(N, Din), prep["enc_wt"], prep["enc_b"],
      *flat_layer_args, prep["out_wt"], prep["out_b"])
    return out.reshape(B, S, Din)


# -------------------------- pure-JAX reference --------------------------------
def reference_forward(x_input, params, window_sizes, pool_size):
    B, S, Din = x_input.shape
    Dsq = params["enc_w"].shape[0]
    P = pool_size // 2
    x = jnp.einsum("bsi,oi->bso", x_input, params["enc_w"], precision=HIGH) + params["enc_b"]
    for li, W in enumerate(window_sizes):
        weight, bias = params["sw_w"][li], params["sw_b"][li]
        padded = jnp.zeros((B, S + W - 1, Dsq), x.dtype).at[:, W - 1:, :].set(x)
        windows = jnp.stack([padded[:, w:w + S, :] for w in range(W)], axis=-1)  # (B,S,D,W)
        flat = windows.reshape(B, S, Dsq * W)
        x = jnp.einsum("bsk,ok->bso", flat, weight, precision=HIGH) + bias
        # max-pool branch (mirrors the PyTorch code path)
        xc = x[:, :S - P, :]
        pp = jnp.concatenate([jnp.full((B, P, Dsq), -jnp.inf, x.dtype), xc,
                              jnp.full((B, P, Dsq), -jnp.inf, x.dtype)], axis=1)
        Lout = (S - P) + 2 * P - pool_size + 1
        pooled = jnp.stack([pp[:, j:j + pool_size, :].max(axis=1) for j in range(Lout)], axis=1)
        pooled = pooled[:, :-1, :]
        x = jnp.concatenate([jnp.zeros((B, P, Dsq), x.dtype), pooled], axis=1)
        mean = x.mean(-1, keepdims=True)
        var = ((x - mean) ** 2).mean(-1, keepdims=True)
        x = (x - mean) / jnp.sqrt(var + 1e-5) * params["ln_g"][li] + params["ln_b"][li]
        x = jnp.where(x > 0, x, 0.01 * x)
    cat = jnp.concatenate([x, x_input], axis=-1)
    out = jnp.einsum("bsk,ok->bso", cat, params["out_w"], precision=HIGH) + params["out_b"]
    return out + x_input


# --------------------------------- main ---------------------------------------
if __name__ == "__main__":
    B, S, Din, Dsq = 2, 16, 128, 128
    window_sizes = (3, 5)
    pool_size = 4                     # padding = pool_size // 2 = 2

    key = jax.random.PRNGKey(0)
    ks = jax.random.split(key, 16)
    params = {
        "enc_w": jax.random.normal(ks[0], (Dsq, Din), jnp.float32) / math.sqrt(Din),
        "enc_b": jax.random.normal(ks[1], (Dsq,), jnp.float32) * 0.01,
        # SlidingWindowLinear weights/biases (scaled by 1e-4 as in the module)
        "sw_w": [jax.random.normal(ks[2 + i], (Dsq, Dsq * w), jnp.float32)
                 * (1e-4 / math.sqrt(Dsq * w)) for i, w in enumerate(window_sizes)],
        "sw_b": [jax.random.normal(ks[6 + i], (Dsq,), jnp.float32) * 1e-4
                 for i, _ in enumerate(window_sizes)],
        "ln_g": [jnp.ones((Dsq,), jnp.float32) for _ in window_sizes],
        "ln_b": [jnp.zeros((Dsq,), jnp.float32) for _ in window_sizes],
        # out_linear scaled by 1e-5 as in the module
        "out_w": jax.random.normal(ks[10], (Din, Dsq + Din), jnp.float32) * 1e-5,
        "out_b": jax.random.normal(ks[11], (Din,), jnp.float32) * 1e-5,
    }
    x_input = jax.random.normal(ks[12], (B, S, Din), jnp.float32)

    prep = prepare_params(params, window_sizes)
    out = stacked_sliding_window_forward(x_input, prep, window_sizes, pool_size)
    out = jax.block_until_ready(out)

    ref = reference_forward(x_input, params, window_sizes, pool_size)
    np.testing.assert_allclose(np.asarray(out), np.asarray(ref), rtol=1e-3, atol=1e-4)
    print("KERNEL_OK")
</pallas_src>

<mosaic_0001>
module attributes {stable_mosaic.version = 11 : i64} {
  func.func @kernel(%arg0: i32, %arg1: memref<32x128xf32, #tpu.memory_space<vmem>>, %arg2: memref<128x128xf32, #tpu.memory_space<vmem>>, %arg3: memref<1x128xf32, #tpu.memory_space<vmem>>, %arg4: memref<384x128xf32, #tpu.memory_space<vmem>>, %arg5: memref<3x128xf32, #tpu.memory_space<vmem>>, %arg6: memref<640x128xf32, #tpu.memory_space<vmem>>, %arg7: memref<3x128xf32, #tpu.memory_space<vmem>>, %arg8: memref<256x128xf32, #tpu.memory_space<vmem>>, %arg9: memref<1x128xf32, #tpu.memory_space<vmem>>, %arg10: memref<32x128xf32, #tpu.memory_space<vmem>>) attributes {dimension_semantics = [#tpu.dimension_semantics<arbitrary>], iteration_bounds = array<i64: 1>, scalar_prefetch = 0 : i64, scratch_operands = 0 : i64, tpu.core_type = #tpu.core_type<tc>, window_params = [{pipeline_mode = #tpu.pipeline_mode<synchronous>, transform_indices = @transform_0, window_bounds = array<i64: 32, 128>}, {pipeline_mode = #tpu.pipeline_mode<synchronous>, transform_indices = @transform_1, window_bounds = array<i64: 128, 128>}, {pipeline_mode = #tpu.pipeline_mode<synchronous>, transform_indices = @transform_2, window_bounds = array<i64: 1, 128>}, {pipeline_mode = #tpu.pipeline_mode<synchronous>, transform_indices = @transform_3, window_bounds = array<i64: 384, 128>}, {pipeline_mode = #tpu.pipeline_mode<synchronous>, transform_indices = @transform_4, window_bounds = array<i64: 3, 128>}, {pipeline_mode = #tpu.pipeline_mode<synchronous>, transform_indices = @transform_5, window_bounds = array<i64: 640, 128>}, {pipeline_mode = #tpu.pipeline_mode<synchronous>, transform_indices = @transform_6, window_bounds = array<i64: 3, 128>}, {pipeline_mode = #tpu.pipeline_mode<synchronous>, transform_indices = @transform_7, window_bounds = array<i64: 256, 128>}, {pipeline_mode = #tpu.pipeline_mode<synchronous>, transform_indices = @transform_8, window_bounds = array<i64: 1, 128>}, {pipeline_mode = #tpu.pipeline_mode<synchronous>, transform_indices = @transform_9, window_bounds = array<i64: 32, 128>}]} {
    %c0 = arith.constant 0 : index
    %c0_0 = arith.constant 0 : index
    %0 = vector.load %arg1[%c0, %c0_0] : memref<32x128xf32, #tpu.memory_space<vmem>>, vector<32x128xf32>
    %c0_1 = arith.constant 0 : index
    %c0_2 = arith.constant 0 : index
    %1 = vector.load %arg2[%c0_1, %c0_2] : memref<128x128xf32, #tpu.memory_space<vmem>>, vector<128x128xf32>
    %cst = arith.constant dense<0.000000e+00> : vector<32x128xf32>
    %2 = tpu.matmul %0, %1, %cst {dimension_numbers = #tpu.dot_dimension_numbers<[1], [0], [0], [1], [0, 0, 1, 1], [], []>} : vector<32x128xf32>, vector<128x128xf32>, vector<32x128xf32> -> vector<32x128xf32>
    %c0_3 = arith.constant 0 : index
    %c0_4 = arith.constant 0 : index
    %3 = vector.load %arg3[%c0_3, %c0_4] : memref<1x128xf32, #tpu.memory_space<vmem>>, vector<1x128xf32>
    %4 = vector.broadcast %3 : vector<1x128xf32> to vector<32x128xf32>
    %5 = arith.addf %2, %4 : vector<32x128xf32>
    %6 = tpu.iota {dimensions = array<i32: 0>} : vector<32x128xi32>
    %c16_i32 = arith.constant 16 : i32
    %c0_i32 = arith.constant 0 : i32
    %7 = arith.cmpi eq, %c16_i32, %c0_i32 : i32
    %c1_i32 = arith.constant 1 : i32
    %8 = arith.select %7, %c1_i32, %c16_i32 : i32
    %9 = vector.broadcast %8 : i32 to vector<32x128xi32>
    %10 = arith.remsi %6, %9 : vector<32x128xi32>
    %c0_i32_5 = arith.constant 0 : i32
    %11 = vector.broadcast %c0_i32_5 : i32 to vector<32x128xi32>
    %12 = arith.cmpi ne, %10, %11 : vector<32x128xi32>
    %c0_i32_6 = arith.constant 0 : i32
    %13 = vector.broadcast %c0_i32_6 : i32 to vector<32x128xi32>
    %14 = arith.cmpi slt, %10, %13 : vector<32x128xi32>
    %c0_i32_7 = arith.constant 0 : i32
    %15 = arith.cmpi slt, %8, %c0_i32_7 : i32
    %16 = vector.broadcast %15 : i1 to vector<32x128xi1>
    %17 = vector.broadcast %16 : vector<32x128xi1> to vector<32x128xi1>
    %18 = arith.xori %14, %17 : vector<32x128xi1>
    %19 = arith.andi %18, %12 : vector<32x128xi1>
    %20 = vector.broadcast %8 : i32 to vector<32x128xi32>
    %21 = arith.addi %10, %20 : vector<32x128xi32>
    %22 = arith.select %19, %21, %10 : vector<32x128xi1>, vector<32x128xi32>
    %c2_i32 = arith.constant 2 : i32
    %23 = tpu.dynamic_rotate %5 by %c2_i32 dim 0 : vector<32x128xf32>, i32 -> vector<32x128xf32>
    %c2_i32_8 = arith.constant 2 : i32
    %24 = vector.broadcast %c2_i32_8 : i32 to vector<32x128xi32>
    %25 = arith.cmpi sge, %22, %24 : vector<32x128xi32>
    %cst_9 = arith.constant 0.000000e+00 : f32
    %26 = vector.broadcast %cst_9 : f32 to vector<32x128xf32>
    %27 = arith.select %25, %23, %26 : vector<32x128xi1>, vector<32x128xf32>
    %c1_i32_10 = arith.constant 1 : i32
    %28 = tpu.dynamic_rotate %5 by %c1_i32_10 dim 0 : vector<32x128xf32>, i32 -> vector<32x128xf32>
    %c1_i32_11 = arith.constant 1 : i32
    %29 = vector.broadcast %c1_i32_11 : i32 to vector<32x128xi32>
    %30 = arith.cmpi sge, %22, %29 : vector<32x128xi32>
    %cst_12 = arith.constant 0.000000e+00 : f32
    %31 = vector.broadcast %cst_12 : f32 to vector<32x128xf32>
    %32 = arith.select %30, %28, %31 : vector<32x128xi1>, vector<32x128xf32>
    %33 = tpu.concatenate %27, %32, %5 in 1 : vector<32x128xf32>, vector<32x128xf32>, vector<32x128xf32> -> vector<32x384xf32>
    %c0_13 = arith.constant 0 : index
    %c0_14 = arith.constant 0 : index
    %34 = vector.load %arg4[%c0_13, %c0_14] : memref<384x128xf32, #tpu.memory_space<vmem>>, vector<384x128xf32>
    %cst_15 = arith.constant dense<0.000000e+00> : vector<32x128xf32>
    %35 = tpu.matmul %33, %34, %cst_15 {dimension_numbers = #tpu.dot_dimension_numbers<[1], [0], [0], [1], [0, 0, 1, 1], [], []>} : vector<32x384xf32>, vector<384x128xf32>, vector<32x128xf32> -> vector<32x128xf32>
    %c0_16 = arith.constant 0 : index
    %c0_17 = arith.constant 0 : index
    %36 = vector.load %arg5[%c0_16, %c0_17] : memref<3x128xf32, #tpu.memory_space<vmem>>, vector<1x128xf32>
    %37 = vector.broadcast %36 : vector<1x128xf32> to vector<32x128xf32>
    %38 = arith.addf %35, %37 : vector<32x128xf32>
    %c14_i32 = arith.constant 14 : i32
    %39 = vector.broadcast %c14_i32 : i32 to vector<32x128xi32>
    %40 = arith.cmpi slt, %22, %39 : vector<32x128xi32>
    %cst_18 = arith.constant -1.000000e+30 : f32
    %41 = vector.broadcast %cst_18 : f32 to vector<32x128xf32>
    %42 = arith.select %40, %38, %41 : vector<32x128xi1>, vector<32x128xf32>
    %cst_19 = arith.constant -1.000000e+30 : f32
    %43 = vector.broadcast %cst_19 : f32 to vector<32x128xf32>
    %c1_i32_20 = arith.constant 1 : i32
    %44 = tpu.dynamic_rotate %42 by %c1_i32_20 dim 0 : vector<32x128xf32>, i32 -> vector<32x128xf32>
    %c1_i32_21 = arith.constant 1 : i32
    %45 = vector.broadcast %c1_i32_21 : i32 to vector<32x128xi32>
    %46 = arith.cmpi sge, %22, %45 : vector<32x128xi32>
    %cst_22 = arith.constant -1.000000e+30 : f32
    %47 = vector.broadcast %cst_22 : f32 to vector<32x128xf32>
    %48 = arith.select %46, %44, %47 : vector<32x128xi1>, vector<32x128xf32>
    %49 = arith.maximumf %43, %48 : vector<32x128xf32>
    %c2_i32_23 = arith.constant 2 : i32
    %50 = tpu.dynamic_rotate %42 by %c2_i32_23 dim 0 : vector<32x128xf32>, i32 -> vector<32x128xf32>
    %c2_i32_24 = arith.constant 2 : i32
    %51 = vector.broadcast %c2_i32_24 : i32 to vector<32x128xi32>
    %52 = arith.cmpi sge, %22, %51 : vector<32x128xi32>
    %cst_25 = arith.constant -1.000000e+30 : f32
    %53 = vector.broadcast %cst_25 : f32 to vector<32x128xf32>
    %54 = arith.select %52, %50, %53 : vector<32x128xi1>, vector<32x128xf32>
    %55 = arith.maximumf %49, %54 : vector<32x128xf32>
    %c3_i32 = arith.constant 3 : i32
    %56 = tpu.dynamic_rotate %42 by %c3_i32 dim 0 : vector<32x128xf32>, i32 -> vector<32x128xf32>
    %c3_i32_26 = arith.constant 3 : i32
    %57 = vector.broadcast %c3_i32_26 : i32 to vector<32x128xi32>
    %58 = arith.cmpi sge, %22, %57 : vector<32x128xi32>
    %cst_27 = arith.constant -1.000000e+30 : f32
    %59 = vector.broadcast %cst_27 : f32 to vector<32x128xf32>
    %60 = arith.select %58, %56, %59 : vector<32x128xi1>, vector<32x128xf32>
    %61 = arith.maximumf %55, %60 : vector<32x128xf32>
    %c4_i32 = arith.constant 4 : i32
    %62 = tpu.dynamic_rotate %42 by %c4_i32 dim 0 : vector<32x128xf32>, i32 -> vector<32x128xf32>
    %c4_i32_28 = arith.constant 4 : i32
    %63 = vector.broadcast %c4_i32_28 : i32 to vector<32x128xi32>
    %64 = arith.cmpi sge, %22, %63 : vector<32x128xi32>
    %cst_29 = arith.constant -1.000000e+30 : f32
    %65 = vector.broadcast %cst_29 : f32 to vector<32x128xf32>
    %66 = arith.select %64, %62, %65 : vector<32x128xi1>, vector<32x128xf32>
    %67 = arith.maximumf %61, %66 : vector<32x128xf32>
    %c2_i32_30 = arith.constant 2 : i32
    %68 = vector.broadcast %c2_i32_30 : i32 to vector<32x128xi32>
    %69 = arith.cmpi slt, %22, %68 : vector<32x128xi32>
    %cst_31 = arith.constant 0.000000e+00 : f32
    %70 = vector.broadcast %cst_31 : f32 to vector<32x128xf32>
    %71 = arith.select %69, %70, %67 : vector<32x128xi1>, vector<32x128xf32>
    %cst_32 = arith.constant dense<0.000000e+00> : vector<32xf32>
    %72 = vector.multi_reduction <add>, %71, %cst_32 [1] : vector<32x128xf32> to vector<32xf32>
    %73 = vector.shape_cast %72 : vector<32xf32> to vector<32x1xf32>
    %cst_33 = arith.constant 1.280000e+02 : f32
    %74 = vector.broadcast %cst_33 : f32 to vector<32x1xf32>
    %75 = arith.divf %73, %74 : vector<32x1xf32>
    %76 = vector.broadcast %75 : vector<32x1xf32> to vector<32x128xf32>
    %77 = arith.subf %71, %76 : vector<32x128xf32>
    %78 = arith.mulf %77, %77 : vector<32x128xf32>
    %cst_34 = arith.constant dense<0.000000e+00> : vector<32xf32>
    %79 = vector.multi_reduction <add>, %78, %cst_34 [1] : vector<32x128xf32> to vector<32xf32>
    %80 = vector.shape_cast %79 : vector<32xf32> to vector<32x1xf32>
    %cst_35 = arith.constant 1.280000e+02 : f32
    %81 = vector.broadcast %cst_35 : f32 to vector<32x1xf32>
    %82 = arith.divf %80, %81 : vector<32x1xf32>
    %83 = vector.broadcast %75 : vector<32x1xf32> to vector<32x128xf32>
    %84 = arith.subf %71, %83 : vector<32x128xf32>
    %cst_36 = arith.constant 9.99999974E-6 : f32
    %85 = vector.broadcast %cst_36 : f32 to vector<32x1xf32>
    %86 = arith.addf %82, %85 : vector<32x1xf32>
    %87 = math.rsqrt %86 : vector<32x1xf32>
    %88 = vector.broadcast %87 : vector<32x1xf32> to vector<32x128xf32>
    %89 = arith.mulf %84, %88 : vector<32x128xf32>
    %c1 = arith.constant 1 : index
    %c0_37 = arith.constant 0 : index
    %90 = vector.load %arg5[%c1, %c0_37] : memref<3x128xf32, #tpu.memory_space<vmem>>, vector<1x128xf32>
    %91 = vector.broadcast %90 : vector<1x128xf32> to vector<32x128xf32>
    %92 = arith.mulf %89, %91 : vector<32x128xf32>
    %c2 = arith.constant 2 : index
    %c0_38 = arith.constant 0 : index
    %93 = vector.load %arg5[%c2, %c0_38] : memref<3x128xf32, #tpu.memory_space<vmem>>, vector<1x128xf32>
    %94 = vector.broadcast %93 : vector<1x128xf32> to vector<32x128xf32>
    %95 = arith.addf %92, %94 : vector<32x128xf32>
    %cst_39 = arith.constant 0.000000e+00 : f32
    %96 = vector.broadcast %cst_39 : f32 to vector<32x128xf32>
    %97 = arith.cmpf ogt, %95, %96 : vector<32x128xf32>
    %cst_40 = arith.constant 0.00999999977 : f32
    %98 = vector.broadcast %cst_40 : f32 to vector<32x128xf32>
    %99 = arith.mulf %98, %95 : vector<32x128xf32>
    %100 = arith.select %97, %95, %99 : vector<32x128xi1>, vector<32x128xf32>
    %c4_i32_41 = arith.constant 4 : i32
    %101 = tpu.dynamic_rotate %100 by %c4_i32_41 dim 0 : vector<32x128xf32>, i32 -> vector<32x128xf32>
    %c4_i32_42 = arith.constant 4 : i32
    %102 = vector.broadcast %c4_i32_42 : i32 to vector<32x128xi32>
    %103 = arith.cmpi sge, %22, %102 : vector<32x128xi32>
    %cst_43 = arith.constant 0.000000e+00 : f32
    %104 = vector.broadcast %cst_43 : f32 to vector<32x128xf32>
    %105 = arith.select %103, %101, %104 : vector<32x128xi1>, vector<32x128xf32>
    %c3_i32_44 = arith.constant 3 : i32
    %106 = tpu.dynamic_rotate %100 by %c3_i32_44 dim 0 : vector<32x128xf32>, i32 -> vector<32x128xf32>
    %c3_i32_45 = arith.constant 3 : i32
    %107 = vector.broadcast %c3_i32_45 : i32 to vector<32x128xi32>
    %108 = arith.cmpi sge, %22, %107 : vector<32x128xi32>
    %cst_46 = arith.constant 0.000000e+00 : f32
    %109 = vector.broadcast %cst_46 : f32 to vector<32x128xf32>
    %110 = arith.select %108, %106, %109 : vector<32x128xi1>, vector<32x128xf32>
    %c2_i32_47 = arith.constant 2 : i32
    %111 = tpu.dynamic_rotate %100 by %c2_i32_47 dim 0 : vector<32x128xf32>, i32 -> vector<32x128xf32>
    %c2_i32_48 = arith.constant 2 : i32
    %112 = vector.broadcast %c2_i32_48 : i32 to vector<32x128xi32>
    %113 = arith.cmpi sge, %22, %112 : vector<32x128xi32>
    %cst_49 = arith.constant 0.000000e+00 : f32
    %114 = vector.broadcast %cst_49 : f32 to vector<32x128xf32>
    %115 = arith.select %113, %111, %114 : vector<32x128xi1>, vector<32x128xf32>
    %c1_i32_50 = arith.constant 1 : i32
    %116 = tpu.dynamic_rotate %100 by %c1_i32_50 dim 0 : vector<32x128xf32>, i32 -> vector<32x128xf32>
    %c1_i32_51 = arith.constant 1 : i32
    %117 = vector.broadcast %c1_i32_51 : i32 to vector<32x128xi32>
    %118 = arith.cmpi sge, %22, %117 : vector<32x128xi32>
    %cst_52 = arith.constant 0.000000e+00 : f32
    %119 = vector.broadcast %cst_52 : f32 to vector<32x128xf32>
    %120 = arith.select %118, %116, %119 : vector<32x128xi1>, vector<32x128xf32>
    %121 = tpu.concatenate %105, %110, %115, %120, %100 in 1 : vector<32x128xf32>, vector<32x128xf32>, vector<32x128xf32>, vector<32x128xf32>, vector<32x128xf32> -> vector<32x640xf32>
    %c0_53 = arith.constant 0 : index
    %c0_54 = arith.constant 0 : index
    %122 = vector.load %arg6[%c0_53, %c0_54] : memref<640x128xf32, #tpu.memory_space<vmem>>, vector<640x128xf32>
    %cst_55 = arith.constant dense<0.000000e+00> : vector<32x128xf32>
    %123 = tpu.matmul %121, %122, %cst_55 {dimension_numbers = #tpu.dot_dimension_numbers<[1], [0], [0], [1], [0, 0, 1, 1], [], []>} : vector<32x640xf32>, vector<640x128xf32>, vector<32x128xf32> -> vector<32x128xf32>
    %c0_56 = arith.constant 0 : index
    %c0_57 = arith.constant 0 : index
    %124 = vector.load %arg7[%c0_56, %c0_57] : memref<3x128xf32, #tpu.memory_space<vmem>>, vector<1x128xf32>
    %125 = vector.broadcast %124 : vector<1x128xf32> to vector<32x128xf32>
    %126 = arith.addf %123, %125 : vector<32x128xf32>
    %c14_i32_58 = arith.constant 14 : i32
    %127 = vector.broadcast %c14_i32_58 : i32 to vector<32x128xi32>
    %128 = arith.cmpi slt, %22, %127 : vector<32x128xi32>
    %cst_59 = arith.constant -1.000000e+30 : f32
    %129 = vector.broadcast %cst_59 : f32 to vector<32x128xf32>
    %130 = arith.select %128, %126, %129 : vector<32x128xi1>, vector<32x128xf32>
    %cst_60 = arith.constant -1.000000e+30 : f32
    %131 = vector.broadcast %cst_60 : f32 to vector<32x128xf32>
    %c1_i32_61 = arith.constant 1 : i32
    %132 = tpu.dynamic_rotate %130 by %c1_i32_61 dim 0 : vector<32x128xf32>, i32 -> vector<32x128xf32>
    %c1_i32_62 = arith.constant 1 : i32
    %133 = vector.broadcast %c1_i32_62 : i32 to vector<32x128xi32>
    %134 = arith.cmpi sge, %22, %133 : vector<32x128xi32>
    %cst_63 = arith.constant -1.000000e+30 : f32
    %135 = vector.broadcast %cst_63 : f32 to vector<32x128xf32>
    %136 = arith.select %134, %132, %135 : vector<32x128xi1>, vector<32x128xf32>
    %137 = arith.maximumf %131, %136 : vector<32x128xf32>
    %c2_i32_64 = arith.constant 2 : i32
    %138 = tpu.dynamic_rotate %130 by %c2_i32_64 dim 0 : vector<32x128xf32>, i32 -> vector<32x128xf32>
    %c2_i32_65 = arith.constant 2 : i32
    %139 = vector.broadcast %c2_i32_65 : i32 to vector<32x128xi32>
    %140 = arith.cmpi sge, %22, %139 : vector<32x128xi32>
    %cst_66 = arith.constant -1.000000e+30 : f32
    %141 = vector.broadcast %cst_66 : f32 to vector<32x128xf32>
    %142 = arith.select %140, %138, %141 : vector<32x128xi1>, vector<32x128xf32>
    %143 = arith.maximumf %137, %142 : vector<32x128xf32>
    %c3_i32_67 = arith.constant 3 : i32
    %144 = tpu.dynamic_rotate %130 by %c3_i32_67 dim 0 : vector<32x128xf32>, i32 -> vector<32x128xf32>
    %c3_i32_68 = arith.constant 3 : i32
    %145 = vector.broadcast %c3_i32_68 : i32 to vector<32x128xi32>
    %146 = arith.cmpi sge, %22, %145 : vector<32x128xi32>
    %cst_69 = arith.constant -1.000000e+30 : f32
    %147 = vector.broadcast %cst_69 : f32 to vector<32x128xf32>
    %148 = arith.select %146, %144, %147 : vector<32x128xi1>, vector<32x128xf32>
    %149 = arith.maximumf %143, %148 : vector<32x128xf32>
    %c4_i32_70 = arith.constant 4 : i32
    %150 = tpu.dynamic_rotate %130 by %c4_i32_70 dim 0 : vector<32x128xf32>, i32 -> vector<32x128xf32>
    %c4_i32_71 = arith.constant 4 : i32
    %151 = vector.broadcast %c4_i32_71 : i32 to vector<32x128xi32>
    %152 = arith.cmpi sge, %22, %151 : vector<32x128xi32>
    %cst_72 = arith.constant -1.000000e+30 : f32
    %153 = vector.broadcast %cst_72 : f32 to vector<32x128xf32>
    %154 = arith.select %152, %150, %153 : vector<32x128xi1>, vector<32x128xf32>
    %155 = arith.maximumf %149, %154 : vector<32x128xf32>
    %c2_i32_73 = arith.constant 2 : i32
    %156 = vector.broadcast %c2_i32_73 : i32 to vector<32x128xi32>
    %157 = arith.cmpi slt, %22, %156 : vector<32x128xi32>
    %cst_74 = arith.constant 0.000000e+00 : f32
    %158 = vector.broadcast %cst_74 : f32 to vector<32x128xf32>
    %159 = arith.select %157, %158, %155 : vector<32x128xi1>, vector<32x128xf32>
    %cst_75 = arith.constant dense<0.000000e+00> : vector<32xf32>
    %160 = vector.multi_reduction <add>, %159, %cst_75 [1] : vector<32x128xf32> to vector<32xf32>
    %161 = vector.shape_cast %160 : vector<32xf32> to vector<32x1xf32>
    %cst_76 = arith.constant 1.280000e+02 : f32
    %162 = vector.broadcast %cst_76 : f32 to vector<32x1xf32>
    %163 = arith.divf %161, %162 : vector<32x1xf32>
    %164 = vector.broadcast %163 : vector<32x1xf32> to vector<32x128xf32>
    %165 = arith.subf %159, %164 : vector<32x128xf32>
    %166 = arith.mulf %165, %165 : vector<32x128xf32>
    %cst_77 = arith.constant dense<0.000000e+00> : vector<32xf32>
    %167 = vector.multi_reduction <add>, %166, %cst_77 [1] : vector<32x128xf32> to vector<32xf32>
    %168 = vector.shape_cast %167 : vector<32xf32> to vector<32x1xf32>
    %cst_78 = arith.constant 1.280000e+02 : f32
    %169 = vector.broadcast %cst_78 : f32 to vector<32x1xf32>
    %170 = arith.divf %168, %169 : vector<32x1xf32>
    %171 = vector.broadcast %163 : vector<32x1xf32> to vector<32x128xf32>
    %172 = arith.subf %159, %171 : vector<32x128xf32>
    %cst_79 = arith.constant 9.99999974E-6 : f32
    %173 = vector.broadcast %cst_79 : f32 to vector<32x1xf32>
    %174 = arith.addf %170, %173 : vector<32x1xf32>
    %175 = math.rsqrt %174 : vector<32x1xf32>
    %176 = vector.broadcast %175 : vector<32x1xf32> to vector<32x128xf32>
    %177 = arith.mulf %172, %176 : vector<32x128xf32>
    %c1_80 = arith.constant 1 : index
    %c0_81 = arith.constant 0 : index
    %178 = vector.load %arg7[%c1_80, %c0_81] : memref<3x128xf32, #tpu.memory_space<vmem>>, vector<1x128xf32>
    %179 = vector.broadcast %178 : vector<1x128xf32> to vector<32x128xf32>
    %180 = arith.mulf %177, %179 : vector<32x128xf32>
    %c2_82 = arith.constant 2 : index
    %c0_83 = arith.constant 0 : index
    %181 = vector.load %arg7[%c2_82, %c0_83] : memref<3x128xf32, #tpu.memory_space<vmem>>, vector<1x128xf32>
    %182 = vector.broadcast %181 : vector<1x128xf32> to vector<32x128xf32>
    %183 = arith.addf %180, %182 : vector<32x128xf32>
    %cst_84 = arith.constant 0.000000e+00 : f32
    %184 = vector.broadcast %cst_84 : f32 to vector<32x128xf32>
    %185 = arith.cmpf ogt, %183, %184 : vector<32x128xf32>
    %cst_85 = arith.constant 0.00999999977 : f32
    %186 = vector.broadcast %cst_85 : f32 to vector<32x128xf32>
    %187 = arith.mulf %186, %183 : vector<32x128xf32>
    %188 = arith.select %185, %183, %187 : vector<32x128xi1>, vector<32x128xf32>
    %189 = tpu.concatenate %188, %0 in 1 : vector<32x128xf32>, vector<32x128xf32> -> vector<32x256xf32>
    %c0_86 = arith.constant 0 : index
    %c0_87 = arith.constant 0 : index
    %190 = vector.load %arg8[%c0_86, %c0_87] : memref<256x128xf32, #tpu.memory_space<vmem>>, vector<256x128xf32>
    %cst_88 = arith.constant dense<0.000000e+00> : vector<32x128xf32>
    %191 = tpu.matmul %189, %190, %cst_88 {dimension_numbers = #tpu.dot_dimension_numbers<[1], [0], [0], [1], [0, 0, 1, 1], [], []>} : vector<32x256xf32>, vector<256x128xf32>, vector<32x128xf32> -> vector<32x128xf32>
    %c0_89 = arith.constant 0 : index
    %c0_90 = arith.constant 0 : index
    %192 = vector.load %arg9[%c0_89, %c0_90] : memref<1x128xf32, #tpu.memory_space<vmem>>, vector<1x128xf32>
    %193 = vector.broadcast %192 : vector<1x128xf32> to vector<32x128xf32>
    %194 = arith.addf %191, %193 : vector<32x128xf32>
    %195 = arith.addf %194, %0 : vector<32x128xf32>
    %c0_91 = arith.constant 0 : index
    %c0_92 = arith.constant 0 : index
    %196 = vector.load %arg10[%c0_91, %c0_92] : memref<32x128xf32, #tpu.memory_space<vmem>>, vector<32x128xf32>
    tpu.vector_store %arg10[%c0_91, %c0_92], %195 {strides = array<i32>} : memref<32x128xf32, #tpu.memory_space<vmem>>, vector<32x128xf32>,
    return
  }
  func.func @transform_0(%arg0: i32) -> (i32, i32) {
    %c0_i32 = arith.constant 0 : i32
    %c0_i32_0 = arith.constant 0 : i32
    %c0_i32_1 = arith.constant 0 : i32
    return %c0_i32, %c0_i32_0 : i32, i32
  }
  func.func @transform_1(%arg0: i32) -> (i32, i32) {
    %c0_i32 = arith.constant 0 : i32
    %c0_i32_0 = arith.constant 0 : i32
    %c0_i32_1 = arith.constant 0 : i32
    return %c0_i32, %c0_i32_0 : i32, i32
  }
  func.func @transform_2(%arg0: i32) -> (i32, i32) {
    %c0_i32 = arith.constant 0 : i32
    %c0_i32_0 = arith.constant 0 : i32
    %c0_i32_1 = arith.constant 0 : i32
    return %c0_i32, %c0_i32_0 : i32, i32
  }
  func.func @transform_3(%arg0: i32) -> (i32, i32) {
    %c0_i32 = arith.constant 0 : i32
    %c0_i32_0 = arith.constant 0 : i32
    %c0_i32_1 = arith.constant 0 : i32
    return %c0_i32, %c0_i32_0 : i32, i32
  }
  func.func @transform_4(%arg0: i32) -> (i32, i32) {
    %c0_i32 = arith.constant 0 : i32
    %c0_i32_0 = arith.constant 0 : i32
    %c0_i32_1 = arith.constant 0 : i32
    return %c0_i32, %c0_i32_0 : i32, i32
  }
  func.func @transform_5(%arg0: i32) -> (i32, i32) {
    %c0_i32 = arith.constant 0 : i32
    %c0_i32_0 = arith.constant 0 : i32
    %c0_i32_1 = arith.constant 0 : i32
    return %c0_i32, %c0_i32_0 : i32, i32
  }
  func.func @transform_6(%arg0: i32) -> (i32, i32) {
    %c0_i32 = arith.constant 0 : i32
    %c0_i32_0 = arith.constant 0 : i32
    %c0_i32_1 = arith.constant 0 : i32
    return %c0_i32, %c0_i32_0 : i32, i32
  }
  func.func @transform_7(%arg0: i32) -> (i32, i32) {
    %c0_i32 = arith.constant 0 : i32
    %c0_i32_0 = arith.constant 0 : i32
    %c0_i32_1 = arith.constant 0 : i32
    return %c0_i32, %c0_i32_0 : i32, i32
  }
  func.func @transform_8(%arg0: i32) -> (i32, i32) {
    %c0_i32 = arith.constant 0 : i32
    %c0_i32_0 = arith.constant 0 : i32
    %c0_i32_1 = arith.constant 0 : i32
    return %c0_i32, %c0_i32_0 : i32, i32
  }
  func.func @transform_9(%arg0: i32) -> (i32, i32) {
    %c0_i32 = arith.constant 0 : i32
    %c0_i32_0 = arith.constant 0 : i32
    %c0_i32_1 = arith.constant 0 : i32
    return %c0_i32, %c0_i32_0 : i32, i32
  }
}

</mosaic_0001>

<llo_original>
// kernel: tpu_custom_call.1
$region0: #{tpu_custom_call.1}
  #allocation0 [shape = 'u32[]', space=smem, size = 0x4, offset = 0x4, fixed_abs, tag = 'smem constant byte address 0x4 - core index']
  #allocation1 [shape = 'u32[144,128]{1,0:T(1,128)}', space=vmem, size = 0x12000, scoped, tag = 'internal scratch']
  %s0 = inlined_call_operand.hbm [shape: f32[32,128], index: 0, kind: input, shape index: {}]
  %s1 = inlined_call_operand.hbm [shape: f32[128,128], index: 1, kind: input, shape index: {}]
  %s2 = inlined_call_operand.vmem [shape: f32[1,128], index: 2, kind: input, shape index: {}]
  %s3 = inlined_call_operand.hbm [shape: f32[384,128], index: 3, kind: input, shape index: {}]
  %s4 = inlined_call_operand.vmem [shape: f32[3,128], index: 4, kind: input, shape index: {}]
  %s5 = inlined_call_operand.hbm [shape: f32[640,128], index: 5, kind: input, shape index: {}]
  %s6 = inlined_call_operand.vmem [shape: f32[3,128], index: 6, kind: input, shape index: {}]
  %s7 = inlined_call_operand.hbm [shape: f32[256,128], index: 7, kind: input, shape index: {}]
  %s8 = inlined_call_operand.vmem [shape: f32[1,128], index: 8, kind: input, shape index: {}]
  %s9 = inlined_call_operand.hbm [shape: f32[32,128], index: 9, kind: output, shape index: {}]
  %s10 = sld [smem:[#allocation0]]
  $region66: #{tpu_custom_call.1} parent=0
    _
  %s12 = ssub.s32 1, %s10
  %s13 = scalar_select 0, %s12, %s10
  $region1: #{tpu_custom_call.1} parent=0
    #allocation2 [shape = 'u8[16384]{0}', space=vmem, size = 0x4000, scoped, tag = 'input window, operand 0, single buffered']
    #allocation3 [shape = 's32[1]{0}', space=sflag, size = 0x4, scoped, tag = 'scoped memory for tpu_custom_call.1']
    #allocation4 [shape = 's32[1]{0}', space=sflag, size = 0x4, scoped, tag = 'scoped memory for tpu_custom_call.1']
    #allocation5 [shape = 'u8[65536]{0}', space=vmem, size = 0x10000, scoped, tag = 'input window, operand 1, single buffered']
    #allocation6 [shape = 's32[1]{0}', space=sflag, size = 0x4, scoped, tag = 'scoped memory for tpu_custom_call.1']
    #allocation7 [shape = 'u8[196608]{0}', space=vmem, size = 0x30000, scoped, tag = 'input window, operand 3, single buffered']
    #allocation8 [shape = 'u8[327680]{0}', space=vmem, size = 0x50000, scoped, tag = 'input window, operand 5, single buffered']
    #allocation9 [shape = 's32[1]{0}', space=sflag, size = 0x4, scoped, tag = 'scoped memory for tpu_custom_call.1']
    #allocation10 [shape = 'u8[131072]{0}', space=vmem, size = 0x20000, scoped, tag = 'input window, operand 7, single buffered']
    #allocation11 [shape = 'u8[16384]{0}', space=vmem, size = 0x4000, scoped, tag = 'output window, operand 0, single buffered']
    %14 = vsyncpa [#allocation3], 0
    %15 = vsyncpa [#allocation6], 0
    %16 = vsyncpa [#allocation9], 0
    %17 = vsyncpa [#allocation4], 0
    // Predicated region
    $region2: #{tpu_custom_call.1} parent=1 // pred_check
      _
    $region3: #{tpu_custom_call.1} parent=1 // pred_check_branch
      %19 = sbr.rel (0) target = $region5
    $region4: #{tpu_custom_call.1} parent=1 // pred_region
      %s21 = ssub.s32 512, 512
      %22 = vsyncadd [#allocation3], %s21
      %s23 = sshll.u32 [#allocation2], 4
      %s24 = int_to_ptr.vmem [resolvable:$true] %s23
      %29 = dma.hbm_to_vmem [thread:$0]  %s0, 512, %s24, [#allocation3], 128, 128, 8
    $region5: #{tpu_custom_call.1} parent=1 // pred_fallthru
      _
    // Predicated region
    $region6: #{tpu_custom_call.1} parent=1 // pred_check
      _
    $region7: #{tpu_custom_call.1} parent=1 // pred_check_branch
      %31 = sbr.rel (0) target = $region9
    $region8: #{tpu_custom_call.1} parent=1 // pred_region
      %s33 = ssub.s32 2048, 2048
      %34 = vsyncadd [#allocation6], %s33
      %s35 = sshll.u32 [#allocation5], 4
      %s36 = int_to_ptr.vmem [resolvable:$true] %s35
      %41 = dma.hbm_to_vmem [thread:$0]  %s1, 2048, %s36, [#allocation6], 128, 128, 8
    $region9: #{tpu_custom_call.1} parent=1 // pred_fallthru
      _
    // Predicated region
    $region10: #{tpu_custom_call.1} parent=1 // pred_check
      _
    $region11: #{tpu_custom_call.1} parent=1 // pred_check_branch
      %43 = sbr.rel (0) target = $region13
    $region12: #{tpu_custom_call.1} parent=1 // pred_region
      _
    $region13: #{tpu_custom_call.1} parent=1 // pred_fallthru
      _
    // Predicated region
    $region14: #{tpu_custom_call.1} parent=1 // pred_check
      _
    $region15: #{tpu_custom_call.1} parent=1 // pred_check_branch
      %45 = sbr.rel (0) target = $region17
    $region16: #{tpu_custom_call.1} parent=1 // pred_region
      %s47 = ssub.s32 6144, 6144
      %48 = vsyncadd [#allocation6], %s47
      %s49 = sshll.u32 [#allocation7], 4
      %s50 = int_to_ptr.vmem [resolvable:$true] %s49
      %55 = dma.hbm_to_vmem [thread:$0]  %s3, 6144, %s50, [#allocation6], 128, 128, 8
    $region17: #{tpu_custom_call.1} parent=1 // pred_fallthru
      _
    // Predicated region
    $region18: #{tpu_custom_call.1} parent=1 // pred_check
      _
    $region19: #{tpu_custom_call.1} parent=1 // pred_check_branch
      %57 = sbr.rel (0) target = $region21
    $region20: #{tpu_custom_call.1} parent=1 // pred_region
      _
    $region21: #{tpu_custom_call.1} parent=1 // pred_fallthru
      _
    // Predicated region
    $region22: #{tpu_custom_call.1} parent=1 // pred_check
      _
    $region23: #{tpu_custom_call.1} parent=1 // pred_check_branch
      %59 = sbr.rel (0) target = $region25
    $region24: #{tpu_custom_call.1} parent=1 // pred_region
      %s61 = ssub.s32 10240, 10240
      %62 = vsyncadd [#allocation9], %s61
      %s63 = sshll.u32 [#allocation8], 4
      %s64 = int_to_ptr.vmem [resolvable:$true] %s63
      %69 = dma.hbm_to_vmem [thread:$0]  %s5, 10240, %s64, [#allocation9], 128, 128, 8
    $region25: #{tpu_custom_call.1} parent=1 // pred_fallthru
      _
    // Predicated region
    $region26: #{tpu_custom_call.1} parent=1 // pred_check
      _
    $region27: #{tpu_custom_call.1} parent=1 // pred_check_branch
      %71 = sbr.rel (0) target = $region29
    $region28: #{tpu_custom_call.1} parent=1 // pred_region
      _
    $region29: #{tpu_custom_call.1} parent=1 // pred_fallthru
      _
    // Predicated region
    $region30: #{tpu_custom_call.1} parent=1 // pred_check
      _
    $region31: #{tpu_custom_call.1} parent=1 // pred_check_branch
      %73 = sbr.rel (0) target = $region33
    $region32: #{tpu_custom_call.1} parent=1 // pred_region
      %s75 = ssub.s32 4096, 4096
      %76 = vsyncadd [#allocation9], %s75
      %s77 = sshll.u32 [#allocation10], 4
      %s78 = int_to_ptr.vmem [resolvable:$true] %s77
      %83 = dma.hbm_to_vmem [thread:$0]  %s7, 4096, %s78, [#allocation9], 128, 128, 8
    $region33: #{tpu_custom_call.1} parent=1 // pred_fallthru
      _
    // Predicated region
    $region34: #{tpu_custom_call.1} parent=1 // pred_check
      _
    $region35: #{tpu_custom_call.1} parent=1 // pred_check_branch
      %85 = sbr.rel (0) target = $region37
    $region36: #{tpu_custom_call.1} parent=1 // pred_region
      _
    $region37: #{tpu_custom_call.1} parent=1 // pred_fallthru
      _
    // Predicated region
    $region38: #{tpu_custom_call.1} parent=1 // pred_check
      _
    $region39: #{tpu_custom_call.1} parent=1 // pred_check_branch
      %87 = sbr.rel (0) target = $region41
    $region40: #{tpu_custom_call.1} parent=1 // pred_region
      %88 = dma.done [#allocation3], 512
    $region41: #{tpu_custom_call.1} parent=1 // pred_fallthru
      _
    // Predicated region
    $region42: #{tpu_custom_call.1} parent=1 // pred_check
      _
    $region43: #{tpu_custom_call.1} parent=1 // pred_check_branch
      %90 = sbr.rel (0) target = $region45
    $region44: #{tpu_custom_call.1} parent=1 // pred_region
      %91 = dma.done [#allocation6], 2048
    $region45: #{tpu_custom_call.1} parent=1 // pred_fallthru
      _
    // Predicated region
    $region46: #{tpu_custom_call.1} parent=1 // pred_check
      _
    $region47: #{tpu_custom_call.1} parent=1 // pred_check_branch
      %93 = sbr.rel (0) target = $region49
    $region48: #{tpu_custom_call.1} parent=1 // pred_region
      %94 = dma.done [#allocation6], 6144
    $region49: #{tpu_custom_call.1} parent=1 // pred_fallthru
      _
    // Predicated region
    $region50: #{tpu_custom_call.1} parent=1 // pred_check
      _
    $region51: #{tpu_custom_call.1} parent=1 // pred_check_branch
      %96 = sbr.rel (0) target = $region53
    $region52: #{tpu_custom_call.1} parent=1 // pred_region
      %97 = dma.done [#allocation9], 10240
    $region53: #{tpu_custom_call.1} parent=1 // pred_fallthru
      _
    // Predicated region
    $region54: #{tpu_custom_call.1} parent=1 // pred_check
      _
    $region55: #{tpu_custom_call.1} parent=1 // pred_check_branch
      %99 = sbr.rel (0) target = $region57
    $region56: #{tpu_custom_call.1} parent=1 // pred_region
      %100 = dma.done [#allocation9], 4096
    $region57: #{tpu_custom_call.1} parent=1 // pred_fallthru
      _
    %v101 = vld [vmem:[#allocation2] sm:$0xff]
    %v102 = vld [vmem:[#allocation2 + $0x8] sm:$0xff]
    %v103 = vld [vmem:[#allocation2 + $0x10] sm:$0xff]
    %v104 = vld [vmem:[#allocation2 + $0x18] sm:$0xff]
    %v105 = vld [vmem:[#allocation5] sm:$0xff]
    %v106 = vld [vmem:[#allocation5 + $0x8] sm:$0xff]
    %v107 = vld [vmem:[#allocation5 + $0x10] sm:$0xff]
    %v108 = vld [vmem:[#allocation5 + $0x18] sm:$0xff]
    %v109 = vld [vmem:[#allocation5 + $0x20] sm:$0xff]
    %v110 = vld [vmem:[#allocation5 + $0x28] sm:$0xff]
    %v111 = vld [vmem:[#allocation5 + $0x30] sm:$0xff]
    %v112 = vld [vmem:[#allocation5 + $0x38] sm:$0xff]
    %v113 = vld [vmem:[#allocation5 + $0x40] sm:$0xff]
    %v114 = vld [vmem:[#allocation5 + $0x48] sm:$0xff]
    %v115 = vld [vmem:[#allocation5 + $0x50] sm:$0xff]
    %v116 = vld [vmem:[#allocation5 + $0x58] sm:$0xff]
    %v117 = vld [vmem:[#allocation5 + $0x60] sm:$0xff]
    %v118 = vld [vmem:[#allocation5 + $0x68] sm:$0xff]
    %v119 = vld [vmem:[#allocation5 + $0x70] sm:$0xff]
    %v120 = vld [vmem:[#allocation5 + $0x78] sm:$0xff]
    %v121 = vld [vmem:[%s2] sm:$0x1]
    %v123 = vlaneseq
    %v124 = vshrl.u32 %v123, 7
    %v125 = vsub.s32 0, %v124
    %v126 = vrot.slane %v121, %v125
    %128 = vmatprep.subr.mxu0 0.0
    %129 = vmatpush1.msra.mxu0 %v120
    %130 = vmatprep.subr.mxu0 0.0
    %131 = vmatpush1.msra.mxu0 %v119
    %132 = vmatprep.subr.mxu0 0.0
    %133 = vmatpush1.msra.mxu0 %v118
    %134 = vmatprep.subr.mxu0 0.0
    %135 = vmatpush1.msra.mxu0 %v117
    %136 = vmatprep.subr.mxu0 0.0
    %137 = vmatpush1.msra.mxu0 %v116
    %138 = vmatprep.subr.mxu0 0.0
    %139 = vmatpush1.msra.mxu0 %v115
    %140 = vmatprep.subr.mxu0 0.0
    %141 = vmatpush1.msra.mxu0 %v114
    %142 = vmatprep.subr.mxu0 0.0
    %143 = vmatpush1.msra.mxu0 %v113
    %144 = vmatprep.subr.mxu0 0.0
    %145 = vmatpush1.msra.mxu0 %v112
    %146 = vmatprep.subr.mxu0 0.0
    %147 = vmatpush1.msra.mxu0 %v111
    %148 = vmatprep.subr.mxu0 0.0
    %149 = vmatpush1.msra.mxu0 %v110
    %150 = vmatprep.subr.mxu0 0.0
    %151 = vmatpush1.msra.mxu0 %v109
    %152 = vmatprep.subr.mxu0 0.0
    %153 = vmatpush1.msra.mxu0 %v108
    %154 = vmatprep.subr.mxu0 0.0
    %155 = vmatpush1.msra.mxu0 %v107
    %156 = vmatprep.subr.mxu0 0.0
    %157 = vmatpush1.msra.mxu0 %v106
    %158 = vmatprep.subr.mxu0 0.0
    %159 = vmatpush1.msra.mxu0 %v105
    %160 = vmatprep.subr.mxu0 0.0
    %161 = vmatpush2.msra.mxu0 0.0
    %162 = vmatprep.subr.mxu0 0.0
    %163 = vmatpush2.msra.mxu0 0.0
    %164 = vmatprep.subr.mxu0 0.0
    %165 = vmatpush2.msra.mxu0 0.0
    %166 = vmatprep.subr.mxu0 0.0
    %167 = vmatpush2.msra.mxu0 0.0
    %168 = vmatprep.subr.mxu0 0.0
    %169 = vmatpush2.msra.mxu0 0.0
    %170 = vmatprep.subr.mxu0 0.0
    %171 = vmatpush2.msra.mxu0 0.0
    %172 = vmatprep.subr.mxu0 0.0
    %173 = vmatpush2.msra.mxu0 0.0
    %174 = vmatprep.subr.mxu0 0.0
    %175 = vmatpush2.msra.mxu0 0.0
    %176 = vmatprep.subr.mxu0 0.0
    %177 = vmatpush2.msra.mxu0 0.0
    %178 = vmatprep.subr.mxu0 0.0
    %179 = vmatpush2.msra.mxu0 0.0
    %180 = vmatprep.subr.mxu0 0.0
    %181 = vmatpush2.msra.mxu0 0.0
    %182 = vmatprep.subr.mxu0 0.0
    %183 = vmatpush2.msra.mxu0 0.0
    %184 = vmatprep.subr.mxu0 0.0
    %185 = vmatpush2.msra.mxu0 0.0
    %186 = vmatprep.subr.mxu0 0.0
    %187 = vmatpush2.msra.mxu0 0.0
    %188 = vmatprep.subr.mxu0 0.0
    %189 = vmatpush2.msra.mxu0 0.0
    %190 = vmatprep.subr.mxu0 0.0
    %191 = vmatpush2.msra.mxu0 0.0
    %192 = vmatprep.mubr.f32.mxu0 0.0
    %193 = vmatmul.mubr.f32.gmra.mxu0 %v101
    %v194 = vpop.f32.mrf.mxu0
    %v195 = vadd.f32 %v126, %v194
    %v196 = vpop.f32.mrf.mxu0
    %197 = vmatprep.mubr.f32.mxu0 0.0
    %198 = vmatmul.mubr.f32.gmra.mxu0 %v102
    %v199 = vpop.f32.mrf.mxu0
    %v200 = vadd.f32 %v126, %v199
    %v201 = vpop.f32.mrf.mxu0
    %202 = vmatprep.mubr.f32.mxu0 0.0
    %203 = vmatmul.mubr.f32.gmra.mxu0 %v103
    %v204 = vpop.f32.mrf.mxu0
    %v205 = vadd.f32 %v126, %v204
    %v206 = vpop.f32.mrf.mxu0
    %207 = vmatprep.mubr.f32.mxu0 0.0
    %208 = vmatmul.mubr.f32.gmra.mxu0 %v104
    %v209 = vpop.f32.mrf.mxu0
    %v210 = vadd.f32 %v126, %v209
    %v211 = vpop.f32.mrf.mxu0
    %212 = vdwg.mxu0
    %v213 = vlaneseq
    %v214 = vshrl.u32 %v213, 7
    %v215 = vadd.s32 %v214, 8
    %v216 = vadd.s32 %v214, 16
    %v217 = vadd.s32 %v214, 24
    %vm218 = vcmp.lt.s32.totalorder %v214, 0
    %v219 = vsub.s32 0, %v214
    %v220 = vsel %vm218, %v219, %v214
    %v221 = vshrl.u32 %v220, 4
    %v222 = vand.u32 %v220, 15
    %v223 = vsub.s32 0, %v222
    %v224 = vsel %vm218, %v223, %v222
    %vm225 = vcmp.lt.s32.totalorder %v215, 0
    %v226 = vsub.s32 0, %v215
    %v227 = vsel %vm225, %v226, %v215
    %v228 = vshrl.u32 %v227, 4
    %v229 = vand.u32 %v227, 15
    %v230 = vsub.s32 0, %v229
    %v231 = vsel %vm225, %v230, %v229
    %vm232 = vcmp.lt.s32.totalorder %v216, 0
    %v233 = vsub.s32 0, %v216
    %v234 = vsel %vm232, %v233, %v216
    %v235 = vshrl.u32 %v234, 4
    %v236 = vand.u32 %v234, 15
    %v237 = vsub.s32 0, %v236
    %v238 = vsel %vm232, %v237, %v236
    %vm239 = vcmp.lt.s32.totalorder %v217, 0
    %v240 = vsub.s32 0, %v217
    %v241 = vsel %vm239, %v240, %v217
    %v242 = vshrl.u32 %v241, 4
    %v243 = vand.u32 %v241, 15
    %v244 = vsub.s32 0, %v243
    %v245 = vsel %vm239, %v244, %v243
    %vm246 = vcmp.ne.s32.totalorder %v224, 0
    %vm247 = vcmp.ne.s32.totalorder %v231, 0
    %vm248 = vcmp.ne.s32.totalorder %v238, 0
    %vm249 = vcmp.ne.s32.totalorder %v245, 0
    %vm250 = vcmp.lt.s32.totalorder %v224, 0
    %vm251 = vcmp.lt.s32.totalorder %v231, 0
    %vm252 = vcmp.lt.s32.totalorder %v238, 0
    %vm253 = vcmp.lt.s32.totalorder %v245, 0
    %vm254 = vmand %vm250, %vm246
    %vm255 = vmand %vm251, %vm247
    %vm256 = vmand %vm252, %vm248
    %vm257 = vmand %vm253, %vm249
    %v258 = vadd.s32 %v224, 16
    %v259 = vadd.s32 %v231, 16
    %v260 = vadd.s32 %v238, 16
    %v261 = vadd.s32 %v245, 16
    %v262 = vsel %vm254, %v258, %v224
    %v263 = vsel %vm255, %v259, %v231
    %v264 = vsel %vm256, %v260, %v238
    %v265 = vsel %vm257, %v261, %v245
    %v266 = vrot.slane %v195, 6
    %v267 = vrot.slane %v200, 6
    %v268 = vrot.slane %v205, 6
    %v269 = vrot.slane %v210, 6
    %vm270 = vcmp.lt.s32.totalorder %v214, 2
    %v271 = vsel %vm270, %v268, %v269
    %v272 = vsel %vm270, %v267, %v268
    %v273 = vsel %vm270, %v266, %v267
    %v274 = vsel %vm270, %v269, %v266
    %vm275 = vcmp.ge.s32.totalorder %v262, 2
    %vm276 = vcmp.ge.s32.totalorder %v263, 2
    %vm277 = vcmp.ge.s32.totalorder %v264, 2
    %vm278 = vcmp.ge.s32.totalorder %v265, 2
    %v279 = vsel %vm275, %v274, 0.0
    %v280 = vsel %vm276, %v273, 0.0
    %v281 = vsel %vm277, %v272, 0.0
    %v282 = vsel %vm278, %v271, 0.0
    %v283 = vrot.slane %v195, 7
    %v284 = vrot.slane %v200, 7
    %v285 = vrot.slane %v205, 7
    %v286 = vrot.slane %v210, 7
    %vm287 = vcmp.lt.s32.totalorder %v214, 1
    %v288 = vsel %vm287, %v285, %v286
    %v289 = vsel %vm287, %v284, %v285
    %v290 = vsel %vm287, %v283, %v284
    %v291 = vsel %vm287, %v286, %v283
    %vm292 = vcmp.ge.s32.totalorder %v262, 1
    %vm293 = vcmp.ge.s32.totalorder %v263, 1
    %vm294 = vcmp.ge.s32.totalorder %v264, 1
    %vm295 = vcmp.ge.s32.totalorder %v265, 1
    %v296 = vsel %vm292, %v291, 0.0
    %v297 = vsel %vm293, %v290, 0.0
    %v298 = vsel %vm294, %v289, 0.0
    %v299 = vsel %vm295, %v288, 0.0
    %v300 = vld [vmem:[#allocation7] sm:$0xff]
    %v301 = vld [vmem:[#allocation7 + $0x8] sm:$0xff]
    %v302 = vld [vmem:[#allocation7 + $0x10] sm:$0xff]
    %v303 = vld [vmem:[#allocation7 + $0x18] sm:$0xff]
    %v304 = vld [vmem:[#allocation7 + $0x20] sm:$0xff]
    %v305 = vld [vmem:[#allocation7 + $0x28] sm:$0xff]
    %v306 = vld [vmem:[#allocation7 + $0x30] sm:$0xff]
    %v307 = vld [vmem:[#allocation7 + $0x38] sm:$0xff]
    %v308 = vld [vmem:[#allocation7 + $0x40] sm:$0xff]
    %v309 = vld [vmem:[#allocation7 + $0x48] sm:$0xff]
    %v310 = vld [vmem:[#allocation7 + $0x50] sm:$0xff]
    %v311 = vld [vmem:[#allocation7 + $0x58] sm:$0xff]
    %v312 = vld [vmem:[#allocation7 + $0x60] sm:$0xff]
    %v313 = vld [vmem:[#allocation7 + $0x68] sm:$0xff]
    %v314 = vld [vmem:[#allocation7 + $0x70] sm:$0xff]
    %v315 = vld [vmem:[#allocation7 + $0x78] sm:$0xff]
    %v316 = vld [vmem:[#allocation7 + $0x80] sm:$0xff]
    %v317 = vld [vmem:[#allocation7 + $0x88] sm:$0xff]
    %v318 = vld [vmem:[#allocation7 + $0x90] sm:$0xff]
    %v319 = vld [vmem:[#allocation7 + $0x98] sm:$0xff]
    %v320 = vld [vmem:[#allocation7 + $0xa0] sm:$0xff]
    %v321 = vld [vmem:[#allocation7 + $0xa8] sm:$0xff]
    %v322 = vld [vmem:[#allocation7 + $0xb0] sm:$0xff]
    %v323 = vld [vmem:[#allocation7 + $0xb8] sm:$0xff]
    %v324 = vld [vmem:[#allocation7 + $0xc0] sm:$0xff]
    %v325 = vld [vmem:[#allocation7 + $0xc8] sm:$0xff]
    %v326 = vld [vmem:[#allocation7 + $0xd0] sm:$0xff]
    %v327 = vld [vmem:[#allocation7 + $0xd8] sm:$0xff]
    %v328 = vld [vmem:[#allocation7 + $0xe0] sm:$0xff]
    %v329 = vld [vmem:[#allocation7 + $0xe8] sm:$0xff]
    %v330 = vld [vmem:[#allocation7 + $0xf0] sm:$0xff]
    %v331 = vld [vmem:[#allocation7 + $0xf8] sm:$0xff]
    %v332 = vld [vmem:[#allocation7 + $0x100] sm:$0xff]
    %v333 = vld [vmem:[#allocation7 + $0x108] sm:$0xff]
    %v334 = vld [vmem:[#allocation7 + $0x110] sm:$0xff]
    %v335 = vld [vmem:[#allocation7 + $0x118] sm:$0xff]
    %v336 = vld [vmem:[#allocation7 + $0x120] sm:$0xff]
    %v337 = vld [vmem:[#allocation7 + $0x128] sm:$0xff]
    %v338 = vld [vmem:[#allocation7 + $0x130] sm:$0xff]
    %v339 = vld [vmem:[#allocation7 + $0x138] sm:$0xff]
    %v340 = vld [vmem:[#allocation7 + $0x140] sm:$0xff]
    %v341 = vld [vmem:[#allocation7 + $0x148] sm:$0xff]
    %v342 = vld [vmem:[#allocation7 + $0x150] sm:$0xff]
    %v343 = vld [vmem:[#allocation7 + $0x158] sm:$0xff]
    %v344 = vld [vmem:[#allocation7 + $0x160] sm:$0xff]
    %v345 = vld [vmem:[#allocation7 + $0x168] sm:$0xff]
    %v346 = vld [vmem:[#allocation7 + $0x170] sm:$0xff]
    %v347 = vld [vmem:[#allocation7 + $0x178] sm:$0xff]
    %v348 = vld [vmem:[%s4] sm:$0x1]
    %v349 = vlaneseq
    %v350 = vshrl.u32 %v349, 7
    %v351 = vsub.s32 0, %v350
    %v352 = vrot.slane %v348, %v351
    %353 = vmatprep.subr.mxu0 0.0
    %354 = vmatpush1.msra.mxu0 %v315
    %355 = vmatprep.subr.mxu0 0.0
    %356 = vmatpush1.msra.mxu0 %v314
    %357 = vmatprep.subr.mxu0 0.0
    %358 = vmatpush1.msra.mxu0 %v313
    %359 = vmatprep.subr.mxu0 0.0
    %360 = vmatpush1.msra.mxu0 %v312
    %361 = vmatprep.subr.mxu0 0.0
    %362 = vmatpush1.msra.mxu0 %v311
    %363 = vmatprep.subr.mxu0 0.0
    %364 = vmatpush1.msra.mxu0 %v310
    %365 = vmatprep.subr.mxu0 0.0
    %366 = vmatpush1.msra.mxu0 %v309
    %367 = vmatprep.subr.mxu0 0.0
    %368 = vmatpush1.msra.mxu0 %v308
    %369 = vmatprep.subr.mxu0 0.0
    %370 = vmatpush1.msra.mxu0 %v307
    %371 = vmatprep.subr.mxu0 0.0
    %372 = vmatpush1.msra.mxu0 %v306
    %373 = vmatprep.subr.mxu0 0.0
    %374 = vmatpush1.msra.mxu0 %v305
    %375 = vmatprep.subr.mxu0 0.0
    %376 = vmatpush1.msra.mxu0 %v304
    %377 = vmatprep.subr.mxu0 0.0
    %378 = vmatpush1.msra.mxu0 %v303
    %379 = vmatprep.subr.mxu0 0.0
    %380 = vmatpush1.msra.mxu0 %v302
    %381 = vmatprep.subr.mxu0 0.0
    %382 = vmatpush1.msra.mxu0 %v301
    %383 = vmatprep.subr.mxu0 0.0
    %384 = vmatpush1.msra.mxu0 %v300
    %385 = vmatprep.subr.mxu0 0.0
    %386 = vmatpush2.msra.mxu0 %v331
    %387 = vmatprep.subr.mxu0 0.0
    %388 = vmatpush2.msra.mxu0 %v330
    %389 = vmatprep.subr.mxu0 0.0
    %390 = vmatpush2.msra.mxu0 %v329
    %391 = vmatprep.subr.mxu0 0.0
    %392 = vmatpush2.msra.mxu0 %v328
    %393 = vmatprep.subr.mxu0 0.0
    %394 = vmatpush2.msra.mxu0 %v327
    %395 = vmatprep.subr.mxu0 0.0
    %396 = vmatpush2.msra.mxu0 %v326
    %397 = vmatprep.subr.mxu0 0.0
    %398 = vmatpush2.msra.mxu0 %v325
    %399 = vmatprep.subr.mxu0 0.0
    %400 = vmatpush2.msra.mxu0 %v324
    %401 = vmatprep.subr.mxu0 0.0
    %402 = vmatpush2.msra.mxu0 %v323
    %403 = vmatprep.subr.mxu0 0.0
    %404 = vmatpush2.msra.mxu0 %v322
    %405 = vmatprep.subr.mxu0 0.0
    %406 = vmatpush2.msra.mxu0 %v321
    %407 = vmatprep.subr.mxu0 0.0
    %408 = vmatpush2.msra.mxu0 %v320
    %409 = vmatprep.subr.mxu0 0.0
    %410 = vmatpush2.msra.mxu0 %v319
    %411 = vmatprep.subr.mxu0 0.0
    %412 = vmatpush2.msra.mxu0 %v318
    %413 = vmatprep.subr.mxu0 0.0
    %414 = vmatpush2.msra.mxu0 %v317
    %415 = vmatprep.subr.mxu0 0.0
    %416 = vmatpush2.msra.mxu0 %v316
    %417 = vmatprep.mubr.f32.mxu0 %v296
    %418 = vmatmul.mubr.f32.gmra.mxu0 %v279
    %v419 = vpop.f32.mrf.mxu0
    %v420 = vadd.f32 %v352, %v419
    %v421 = vpop.f32.mrf.mxu0
    %422 = vmatprep.mubr.f32.mxu0 %v297
    %423 = vmatmul.mubr.f32.gmra.mxu0 %v280
    %v424 = vpop.f32.mrf.mxu0
    %v425 = vadd.f32 %v352, %v424
    %v426 = vpop.f32.mrf.mxu0
    %427 = vmatprep.mubr.f32.mxu0 %v298
    %428 = vmatmul.mubr.f32.gmra.mxu0 %v281
    %v429 = vpop.f32.mrf.mxu0
    %v430 = vadd.f32 %v352, %v429
    %v431 = vpop.f32.mrf.mxu0
    %432 = vmatprep.mubr.f32.mxu0 %v299
    %433 = vmatmul.mubr.f32.gmra.mxu0 %v282
    %v434 = vpop.f32.mrf.mxu0
    %v435 = vadd.f32 %v352, %v434
    %v436 = vpop.f32.mrf.mxu0
    %437 = vdwg.mxu0
    %438 = vmatprep.subr.mxu0 0.0
    %439 = vmatpush1.msra.mxu0 %v347
    %440 = vmatprep.subr.mxu0 0.0
    %441 = vmatpush1.msra.mxu0 %v346
    %442 = vmatprep.subr.mxu0 0.0
    %443 = vmatpush1.msra.mxu0 %v345
    %444 = vmatprep.subr.mxu0 0.0
    %445 = vmatpush1.msra.mxu0 %v344
    %446 = vmatprep.subr.mxu0 0.0
    %447 = vmatpush1.msra.mxu0 %v343
    %448 = vmatprep.subr.mxu0 0.0
    %449 = vmatpush1.msra.mxu0 %v342
    %450 = vmatprep.subr.mxu0 0.0
    %451 = vmatpush1.msra.mxu0 %v341
    %452 = vmatprep.subr.mxu0 0.0
    %453 = vmatpush1.msra.mxu0 %v340
    %454 = vmatprep.subr.mxu0 0.0
    %455 = vmatpush1.msra.mxu0 %v339
    %456 = vmatprep.subr.mxu0 0.0
    %457 = vmatpush1.msra.mxu0 %v338
    %458 = vmatprep.subr.mxu0 0.0
    %459 = vmatpush1.msra.mxu0 %v337
    %460 = vmatprep.subr.mxu0 0.0
    %461 = vmatpush1.msra.mxu0 %v336
    %462 = vmatprep.subr.mxu0 0.0
    %463 = vmatpush1.msra.mxu0 %v335
    %464 = vmatprep.subr.mxu0 0.0
    %465 = vmatpush1.msra.mxu0 %v334
    %466 = vmatprep.subr.mxu0 0.0
    %467 = vmatpush1.msra.mxu0 %v333
    %468 = vmatprep.subr.mxu0 0.0
    %469 = vmatpush1.msra.mxu0 %v332
    %470 = vmatprep.subr.mxu0 0.0
    %471 = vmatpush2.msra.mxu0 0.0
    %472 = vmatprep.subr.mxu0 0.0
    %473 = vmatpush2.msra.mxu0 0.0
    %474 = vmatprep.subr.mxu0 0.0
    %475 = vmatpush2.msra.mxu0 0.0
    %476 = vmatprep.subr.mxu0 0.0
    %477 = vmatpush2.msra.mxu0 0.0
    %478 = vmatprep.subr.mxu0 0.0
    %479 = vmatpush2.msra.mxu0 0.0
    %480 = vmatprep.subr.mxu0 0.0
    %481 = vmatpush2.msra.mxu0 0.0
    %482 = vmatprep.subr.mxu0 0.0
    %483 = vmatpush2.msra.mxu0 0.0
    %484 = vmatprep.subr.mxu0 0.0
    %485 = vmatpush2.msra.mxu0 0.0
    %486 = vmatprep.subr.mxu0 0.0
    %487 = vmatpush2.msra.mxu0 0.0
    %488 = vmatprep.subr.mxu0 0.0
    %489 = vmatpush2.msra.mxu0 0.0
    %490 = vmatprep.subr.mxu0 0.0
    %491 = vmatpush2.msra.mxu0 0.0
    %492 = vmatprep.subr.mxu0 0.0
    %493 = vmatpush2.msra.mxu0 0.0
    %494 = vmatprep.subr.mxu0 0.0
    %495 = vmatpush2.msra.mxu0 0.0
    %496 = vmatprep.subr.mxu0 0.0
    %497 = vmatpush2.msra.mxu0 0.0
    %498 = vmatprep.subr.mxu0 0.0
    %499 = vmatpush2.msra.mxu0 0.0
    %500 = vmatprep.subr.mxu0 0.0
    %501 = vmatpush2.msra.mxu0 0.0
    %502 = vmatprep.mubr.f32.mxu0 0.0
    %503 = vmatmul.mubr.f32.gmra.mxu0 %v195
    %v504 = vpop.f32.mrf.mxu0
    %v505 = vadd.f32 %v420, %v504
    %v506 = vpop.f32.mrf.mxu0
    %507 = vmatprep.mubr.f32.mxu0 0.0
    %508 = vmatmul.mubr.f32.gmra.mxu0 %v200
    %v509 = vpop.f32.mrf.mxu0
    %v510 = vadd.f32 %v425, %v509
    %v511 = vpop.f32.mrf.mxu0
    %512 = vmatprep.mubr.f32.mxu0 0.0
    %513 = vmatmul.mubr.f32.gmra.mxu0 %v205
    %v514 = vpop.f32.mrf.mxu0
    %v515 = vadd.f32 %v430, %v514
    %v516 = vpop.f32.mrf.mxu0
    %517 = vmatprep.mubr.f32.mxu0 0.0
    %518 = vmatmul.mubr.f32.gmra.mxu0 %v210
    %v519 = vpop.f32.mrf.mxu0
    %v520 = vadd.f32 %v435, %v519
    %v521 = vpop.f32.mrf.mxu0
    %522 = vdwg.mxu0
    %vm523 = vcmp.lt.s32.totalorder %v262, 14
    %vm524 = vcmp.lt.s32.totalorder %v263, 14
    %vm525 = vcmp.lt.s32.totalorder %v264, 14
    %vm526 = vcmp.lt.s32.totalorder %v265, 14
    %v527 = vsel %vm523, %v505, -1e+30
    %v528 = vsel %vm524, %v510, -1e+30
    %v529 = vsel %vm525, %v515, -1e+30
    %v530 = vsel %vm526, %v520, -1e+30
    %v531 = vrot.slane %v527, 7
    %v532 = vrot.slane %v528, 7
    %v533 = vrot.slane %v529, 7
    %v534 = vrot.slane %v530, 7
    %v535 = vsel %vm287, %v533, %v534
    %v536 = vsel %vm287, %v532, %v533
    %v537 = vsel %vm287, %v531, %v532
    %v538 = vsel %vm287, %v534, %v531
    %v539 = vsel %vm292, %v538, -1e+30
    %v540 = vsel %vm293, %v537, -1e+30
    %v541 = vsel %vm294, %v536, -1e+30
    %v542 = vsel %vm295, %v535, -1e+30
    %v543 = vmax.f32 %v539, -1e+30
    %v544 = vmax.f32 %v540, -1e+30
    %v545 = vmax.f32 %v541, -1e+30
    %v546 = vmax.f32 %v542, -1e+30
    %v547 = vrot.slane %v527, 6
    %v548 = vrot.slane %v528, 6
    %v549 = vrot.slane %v529, 6
    %v550 = vrot.slane %v530, 6
    %v551 = vsel %vm270, %v549, %v550
    %v552 = vsel %vm270, %v548, %v549
    %v553 = vsel %vm270, %v547, %v548
    %v554 = vsel %vm270, %v550, %v547
    %v555 = vsel %vm275, %v554, -1e+30
    %v556 = vsel %vm276, %v553, -1e+30
    %v557 = vsel %vm277, %v552, -1e+30
    %v558 = vsel %vm278, %v551, -1e+30
    %v559 = vmax.f32 %v543, %v555
    %v560 = vmax.f32 %v544, %v556
    %v561 = vmax.f32 %v545, %v557
    %v562 = vmax.f32 %v546, %v558
    %v563 = vrot.slane %v527, 5
    %v564 = vrot.slane %v528, 5
    %v565 = vrot.slane %v529, 5
    %v566 = vrot.slane %v530, 5
    %vm567 = vcmp.lt.s32.totalorder %v214, 3
    %v568 = vsel %vm567, %v565, %v566
    %v569 = vsel %vm567, %v564, %v565
    %v570 = vsel %vm567, %v563, %v564
    %v571 = vsel %vm567, %v566, %v563
    %vm572 = vcmp.ge.s32.totalorder %v262, 3
    %vm573 = vcmp.ge.s32.totalorder %v263, 3
    %vm574 = vcmp.ge.s32.totalorder %v264, 3
    %vm575 = vcmp.ge.s32.totalorder %v265, 3
    %v576 = vsel %vm572, %v571, -1e+30
    %v577 = vsel %vm573, %v570, -1e+30
    %v578 = vsel %vm574, %v569, -1e+30
    %v579 = vsel %vm575, %v568, -1e+30
    %v580 = vmax.f32 %v559, %v576
    %v581 = vmax.f32 %v560, %v577
    %v582 = vmax.f32 %v561, %v578
    %v583 = vmax.f32 %v562, %v579
    %v584 = vrot.slane %v527, 4
    %v585 = vrot.slane %v528, 4
    %v586 = vrot.slane %v529, 4
    %v587 = vrot.slane %v530, 4
    %vm588 = vcmp.lt.s32.totalorder %v214, 4
    %v589 = vsel %vm588, %v586, %v587
    %v590 = vsel %vm588, %v585, %v586
    %v591 = vsel %vm588, %v584, %v585
    %v592 = vsel %vm588, %v587, %v584
    %vm593 = vcmp.ge.s32.totalorder %v262, 4
    %vm594 = vcmp.ge.s32.totalorder %v263, 4
    %vm595 = vcmp.ge.s32.totalorder %v264, 4
    %vm596 = vcmp.ge.s32.totalorder %v265, 4
    %v597 = vsel %vm593, %v592, -1e+30
    %v598 = vsel %vm594, %v591, -1e+30
    %v599 = vsel %vm595, %v590, -1e+30
    %v600 = vsel %vm596, %v589, -1e+30
    %v601 = vmax.f32 %v580, %v597
    %v602 = vmax.f32 %v581, %v598
    %v603 = vmax.f32 %v582, %v599
    %v604 = vmax.f32 %v583, %v600
    %vm605 = vcmp.lt.s32.totalorder %v262, 2
    %vm606 = vcmp.lt.s32.totalorder %v263, 2
    %vm607 = vcmp.lt.s32.totalorder %v264, 2
    %vm608 = vcmp.lt.s32.totalorder %v265, 2
    %v609 = vsel %vm605, 0.0, %v601
    %v610 = vsel %vm606, 0.0, %v602
    %v611 = vsel %vm607, 0.0, %v603
    %v612 = vsel %vm608, 0.0, %v604
    %613 = vadd.xlane.f32.xlu0 %v609
    %v614 = vpop.xlane.xlu0 %613
    %615 = vadd.xlane.f32.xlu0 %v610
    %v616 = vpop.xlane.xlu0 %615
    %617 = vadd.xlane.f32.xlu0 %v611
    %v618 = vpop.xlane.xlu0 %617
    %619 = vadd.xlane.f32.xlu0 %v612
    %v620 = vpop.xlane.xlu0 %619
    %v621 = vrcp.pop 128.0
    %v622 = vmul.f32 %v614, %v621
    %v623 = vmul.f32 %v616, %v621
    %v624 = vmul.f32 %v618, %v621
    %v625 = vmul.f32 %v620, %v621
    %v626 = vsub.f32 %v609, %v622
    %v627 = vsub.f32 %v610, %v623
    %v628 = vsub.f32 %v611, %v624
    %v629 = vsub.f32 %v612, %v625
    %v630 = vmul.f32 %v626, %v626
    %v631 = vmul.f32 %v627, %v627
    %v632 = vmul.f32 %v628, %v628
    %v633 = vmul.f32 %v629, %v629
    %634 = vadd.xlane.f32.xlu0 %v630
    %v635 = vpop.xlane.xlu0 %634
    %636 = vadd.xlane.f32.xlu0 %v631
    %v637 = vpop.xlane.xlu0 %636
    %638 = vadd.xlane.f32.xlu0 %v632
    %v639 = vpop.xlane.xlu0 %638
    %640 = vadd.xlane.f32.xlu0 %v633
    %v641 = vpop.xlane.xlu0 %640
    %v642 = vmul.f32 %v635, %v621
    %v643 = vmul.f32 %v637, %v621
    %v644 = vmul.f32 %v639, %v621
    %v645 = vmul.f32 %v641, %v621
    %v646 = vadd.f32 %v642, 1e-05
    %v647 = vadd.f32 %v643, 1e-05
    %v648 = vadd.f32 %v644, 1e-05
    %v649 = vadd.f32 %v645, 1e-05
    %v650 = vrsqrt.pop %v646
    %v651 = vrsqrt.pop %v647
    %v652 = vrsqrt.pop %v648
    %v653 = vrsqrt.pop %v649
    %v654 = vmul.f32 %v626, %v650
    %v655 = vmul.f32 %v627, %v651
    %v656 = vmul.f32 %v628, %v652
    %v657 = vmul.f32 %v629, %v653
    %v658 = vld [vmem:[%s4 + $0x1] sm:$0x1]
    %v659 = vlaneseq
    %v660 = vshrl.u32 %v659, 7
    %v661 = vsub.s32 0, %v660
    %v662 = vrot.slane %v658, %v661
    %v663 = vmul.f32 %v654, %v662
    %v664 = vmul.f32 %v655, %v662
    %v665 = vmul.f32 %v656, %v662
    %v666 = vmul.f32 %v657, %v662
    %v667 = vld [vmem:[%s4 + $0x2] sm:$0x1]
    %v668 = vlaneseq
    %v669 = vshrl.u32 %v668, 7
    %v670 = vsub.s32 0, %v669
    %v671 = vrot.slane %v667, %v670
    %v672 = vadd.f32 %v663, %v671
    %v673 = vadd.f32 %v664, %v671
    %v674 = vadd.f32 %v665, %v671
    %v675 = vadd.f32 %v666, %v671
    %vm676 = vcmp.gt.f32.partialorder %v672, 0.0
    %vm677 = vcmp.gt.f32.partialorder %v673, 0.0
    %vm678 = vcmp.gt.f32.partialorder %v674, 0.0
    %vm679 = vcmp.gt.f32.partialorder %v675, 0.0
    %v680 = vmul.f32 %v672, 0.01
    %v681 = vmul.f32 %v673, 0.01
    %v682 = vmul.f32 %v674, 0.01
    %v683 = vmul.f32 %v675, 0.01
    %v684 = vsel %vm676, %v672, %v680
    %v685 = vsel %vm677, %v673, %v681
    %v686 = vsel %vm678, %v674, %v682
    %v687 = vsel %vm679, %v675, %v683
    %v688 = vrot.slane %v684, 4
    %v689 = vrot.slane %v685, 4
    %v690 = vrot.slane %v686, 4
    %v691 = vrot.slane %v687, 4
    %v692 = vsel %vm588, %v690, %v691
    %v693 = vsel %vm588, %v689, %v690
    %v694 = vsel %vm588, %v688, %v689
    %v695 = vsel %vm588, %v691, %v688
    %v696 = vsel %vm593, %v695, 0.0
    %v697 = vsel %vm594, %v694, 0.0
    %v698 = vsel %vm595, %v693, 0.0
    %v699 = vsel %vm596, %v692, 0.0
    %v700 = vrot.slane %v684, 5
    %v701 = vrot.slane %v685, 5
    %v702 = vrot.slane %v686, 5
    %v703 = vrot.slane %v687, 5
    %v704 = vsel %vm567, %v702, %v703
    %v705 = vsel %vm567, %v701, %v702
    %v706 = vsel %vm567, %v700, %v701
    %v707 = vsel %vm567, %v703, %v700
    %v708 = vsel %vm572, %v707, 0.0
    %v709 = vsel %vm573, %v706, 0.0
    %v710 = vsel %vm574, %v705, 0.0
    %v711 = vsel %vm575, %v704, 0.0
    %v712 = vrot.slane %v684, 6
    %v713 = vrot.slane %v685, 6
    %v714 = vrot.slane %v686, 6
    %v715 = vrot.slane %v687, 6
    %v716 = vsel %vm270, %v714, %v715
    %v717 = vsel %vm270, %v713, %v714
    %v718 = vsel %vm270, %v712, %v713
    %v719 = vsel %vm270, %v715, %v712
    %v720 = vsel %vm275, %v719, 0.0
    %v721 = vsel %vm276, %v718, 0.0
    %v722 = vsel %vm277, %v717, 0.0
    %v723 = vsel %vm278, %v716, 0.0
    %v724 = vrot.slane %v684, 7
    %v725 = vrot.slane %v685, 7
    %v726 = vrot.slane %v686, 7
    %v727 = vrot.slane %v687, 7
    %v728 = vsel %vm287, %v726, %v727
    %v729 = vsel %vm287, %v725, %v726
    %v730 = vsel %vm287, %v724, %v725
    %v731 = vsel %vm287, %v727, %v724
    %v732 = vsel %vm292, %v731, 0.0
    %v733 = vsel %vm293, %v730, 0.0
    %v734 = vsel %vm294, %v729, 0.0
    %v735 = vsel %vm295, %v728, 0.0
    %v736 = vld [vmem:[#allocation8] sm:$0xff]
    %v737 = vld [vmem:[#allocation8 + $0x8] sm:$0xff]
    %v738 = vld [vmem:[#allocation8 + $0x10] sm:$0xff]
    %v739 = vld [vmem:[#allocation8 + $0x18] sm:$0xff]
    %v740 = vld [vmem:[#allocation8 + $0x20] sm:$0xff]
    %v741 = vld [vmem:[#allocation8 + $0x28] sm:$0xff]
    %v742 = vld [vmem:[#allocation8 + $0x30] sm:$0xff]
    %v743 = vld [vmem:[#allocation8 + $0x38] sm:$0xff]
    %v744 = vld [vmem:[#allocation8 + $0x40] sm:$0xff]
    %v745 = vld [vmem:[#allocation8 + $0x48] sm:$0xff]
    %v746 = vld [vmem:[#allocation8 + $0x50] sm:$0xff]
    %v747 = vld [vmem:[#allocation8 + $0x58] sm:$0xff]
    %v748 = vld [vmem:[#allocation8 + $0x60] sm:$0xff]
    %v749 = vld [vmem:[#allocation8 + $0x68] sm:$0xff]
    %v750 = vld [vmem:[#allocation8 + $0x70] sm:$0xff]
    %v751 = vld [vmem:[#allocation8 + $0x78] sm:$0xff]
    %v752 = vld [vmem:[#allocation8 + $0x80] sm:$0xff]
    %v753 = vld [vmem:[#allocation8 + $0x88] sm:$0xff]
    %v754 = vld [vmem:[#allocation8 + $0x90] sm:$0xff]
    %v755 = vld [vmem:[#allocation8 + $0x98] sm:$0xff]
    %v756 = vld [vmem:[#allocation8 + $0xa0] sm:$0xff]
    %v757 = vld [vmem:[#allocation8 + $0xa8] sm:$0xff]
    %v758 = vld [vmem:[#allocation8 + $0xb0] sm:$0xff]
    %v759 = vld [vmem:[#allocation8 + $0xb8] sm:$0xff]
    %v760 = vld [vmem:[#allocation8 + $0xc0] sm:$0xff]
    %v761 = vld [vmem:[#allocation8 + $0xc8] sm:$0xff]
    %v762 = vld [vmem:[#allocation8 + $0xd0] sm:$0xff]
    %v763 = vld [vmem:[#allocation8 + $0xd8] sm:$0xff]
    %v764 = vld [vmem:[#allocation8 + $0xe0] sm:$0xff]
    %v765 = vld [vmem:[#allocation8 + $0xe8] sm:$0xff]
    %v766 = vld [vmem:[#allocation8 + $0xf0] sm:$0xff]
    %v767 = vld [vmem:[#allocation8 + $0xf8] sm:$0xff]
    %v768 = vld [vmem:[#allocation8 + $0x100] sm:$0xff]
    %v769 = vld [vmem:[#allocation8 + $0x108] sm:$0xff]
    %v770 = vld [vmem:[#allocation8 + $0x110] sm:$0xff]
    %v771 = vld [vmem:[#allocation8 + $0x118] sm:$0xff]
    %v772 = vld [vmem:[#allocation8 + $0x120] sm:$0xff]
    %v773 = vld [vmem:[#allocation8 + $0x128] sm:$0xff]
    %v774 = vld [vmem:[#allocation8 + $0x130] sm:$0xff]
    %v775 = vld [vmem:[#allocation8 + $0x138] sm:$0xff]
    %v776 = vld [vmem:[#allocation8 + $0x140] sm:$0xff]
    %v777 = vld [vmem:[#allocation8 + $0x148] sm:$0xff]
    %v778 = vld [vmem:[#allocation8 + $0x150] sm:$0xff]
    %v779 = vld [vmem:[#allocation8 + $0x158] sm:$0xff]
    %v780 = vld [vmem:[#allocation8 + $0x160] sm:$0xff]
    %v781 = vld [vmem:[#allocation8 + $0x168] sm:$0xff]
    %v782 = vld [vmem:[#allocation8 + $0x170] sm:$0xff]
    %v783 = vld [vmem:[#allocation8 + $0x178] sm:$0xff]
    %v784 = vld [vmem:[#allocation8 + $0x180] sm:$0xff]
    %v785 = vld [vmem:[#allocation8 + $0x188] sm:$0xff]
    %v786 = vld [vmem:[#allocation8 + $0x190] sm:$0xff]
    %v787 = vld [vmem:[#allocation8 + $0x198] sm:$0xff]
    %v788 = vld [vmem:[#allocation8 + $0x1a0] sm:$0xff]
    %v789 = vld [vmem:[#allocation8 + $0x1a8] sm:$0xff]
    %v790 = vld [vmem:[#allocation8 + $0x1b0] sm:$0xff]
    %v791 = vld [vmem:[#allocation8 + $0x1b8] sm:$0xff]
    %v792 = vld [vmem:[#allocation8 + $0x1c0] sm:$0xff]
    %v793 = vld [vmem:[#allocation8 + $0x1c8] sm:$0xff]
    %v794 = vld [vmem:[#allocation8 + $0x1d0] sm:$0xff]
    %v795 = vld [vmem:[#allocation8 + $0x1d8] sm:$0xff]
    %v796 = vld [vmem:[#allocation8 + $0x1e0] sm:$0xff]
    %v797 = vld [vmem:[#allocation8 + $0x1e8] sm:$0xff]
    %v798 = vld [vmem:[#allocation8 + $0x1f0] sm:$0xff]
    %v799 = vld [vmem:[#allocation8 + $0x1f8] sm:$0xff]
    %v800 = vld [vmem:[#allocation8 + $0x200] sm:$0xff]
    %v801 = vld [vmem:[#allocation8 + $0x208] sm:$0xff]
    %v802 = vld [vmem:[#allocation8 + $0x210] sm:$0xff]
    %v803 = vld [vmem:[#allocation8 + $0x218] sm:$0xff]
    %v804 = vld [vmem:[#allocation8 + $0x220] sm:$0xff]
    %v805 = vld [vmem:[#allocation8 + $0x228] sm:$0xff]
    %v806 = vld [vmem:[#allocation8 + $0x230] sm:$0xff]
    %v807 = vld [vmem:[#allocation8 + $0x238] sm:$0xff]
    %v808 = vld [vmem:[#allocation8 + $0x240] sm:$0xff]
    %v809 = vld [vmem:[#allocation8 + $0x248] sm:$0xff]
    %v810 = vld [vmem:[#allocation8 + $0x250] sm:$0xff]
    %v811 = vld [vmem:[#allocation8 + $0x258] sm:$0xff]
    %v812 = vld [vmem:[#allocation8 + $0x260] sm:$0xff]
    %v813 = vld [vmem:[#allocation8 + $0x268] sm:$0xff]
    %v814 = vld [vmem:[#allocation8 + $0x270] sm:$0xff]
    %v815 = vld [vmem:[#allocation8 + $0x278] sm:$0xff]
    %v816 = vld [vmem:[%s6] sm:$0x1]
    %v817 = vlaneseq
    %v818 = vshrl.u32 %v817, 7
    %v819 = vsub.s32 0, %v818
    %v820 = vrot.slane %v816, %v819
    %821 = vmatprep.subr.mxu0 0.0
    %822 = vmatpush1.msra.mxu0 %v751
    %823 = vmatprep.subr.mxu0 0.0
    %824 = vmatpush1.msra.mxu0 %v750
    %825 = vmatprep.subr.mxu0 0.0
    %826 = vmatpush1.msra.mxu0 %v749
    %827 = vmatprep.subr.mxu0 0.0
    %828 = vmatpush1.msra.mxu0 %v748
    %829 = vmatprep.subr.mxu0 0.0
    %830 = vmatpush1.msra.mxu0 %v747
    %831 = vmatprep.subr.mxu0 0.0
    %832 = vmatpush1.msra.mxu0 %v746
    %833 = vmatprep.subr.mxu0 0.0
    %834 = vmatpush1.msra.mxu0 %v745
    %835 = vmatprep.subr.mxu0 0.0
    %836 = vmatpush1.msra.mxu0 %v744
    %837 = vmatprep.subr.mxu0 0.0
    %838 = vmatpush1.msra.mxu0 %v743
    %839 = vmatprep.subr.mxu0 0.0
    %840 = vmatpush1.msra.mxu0 %v742
    %841 = vmatprep.subr.mxu0 0.0
    %842 = vmatpush1.msra.mxu0 %v741
    %843 = vmatprep.subr.mxu0 0.0
    %844 = vmatpush1.msra.mxu0 %v740
    %845 = vmatprep.subr.mxu0 0.0
    %846 = vmatpush1.msra.mxu0 %v739
    %847 = vmatprep.subr.mxu0 0.0
    %848 = vmatpush1.msra.mxu0 %v738
    %849 = vmatprep.subr.mxu0 0.0
    %850 = vmatpush1.msra.mxu0 %v737
    %851 = vmatprep.subr.mxu0 0.0
    %852 = vmatpush1.msra.mxu0 %v736
    %853 = vmatprep.subr.mxu0 0.0
    %854 = vmatpush2.msra.mxu0 %v767
    %855 = vmatprep.subr.mxu0 0.0
    %856 = vmatpush2.msra.mxu0 %v766
    %857 = vmatprep.subr.mxu0 0.0
    %858 = vmatpush2.msra.mxu0 %v765
    %859 = vmatprep.subr.mxu0 0.0
    %860 = vmatpush2.msra.mxu0 %v764
    %861 = vmatprep.subr.mxu0 0.0
    %862 = vmatpush2.msra.mxu0 %v763
    %863 = vmatprep.subr.mxu0 0.0
    %864 = vmatpush2.msra.mxu0 %v762
    %865 = vmatprep.subr.mxu0 0.0
    %866 = vmatpush2.msra.mxu0 %v761
    %867 = vmatprep.subr.mxu0 0.0
    %868 = vmatpush2.msra.mxu0 %v760
    %869 = vmatprep.subr.mxu0 0.0
    %870 = vmatpush2.msra.mxu0 %v759
    %871 = vmatprep.subr.mxu0 0.0
    %872 = vmatpush2.msra.mxu0 %v758
    %873 = vmatprep.subr.mxu0 0.0
    %874 = vmatpush2.msra.mxu0 %v757
    %875 = vmatprep.subr.mxu0 0.0
    %876 = vmatpush2.msra.mxu0 %v756
    %877 = vmatprep.subr.mxu0 0.0
    %878 = vmatpush2.msra.mxu0 %v755
    %879 = vmatprep.subr.mxu0 0.0
    %880 = vmatpush2.msra.mxu0 %v754
    %881 = vmatprep.subr.mxu0 0.0
    %882 = vmatpush2.msra.mxu0 %v753
    %883 = vmatprep.subr.mxu0 0.0
    %884 = vmatpush2.msra.mxu0 %v752
    %885 = vmatprep.mubr.f32.mxu0 %v708
    %886 = vmatmul.mubr.f32.gmra.mxu0 %v696
    %v887 = vpop.f32.mrf.mxu0
    %v888 = vadd.f32 %v820, %v887
    %v889 = vpop.f32.mrf.mxu0
    %890 = vmatprep.mubr.f32.mxu0 %v709
    %891 = vmatmul.mubr.f32.gmra.mxu0 %v697
    %v892 = vpop.f32.mrf.mxu0
    %v893 = vadd.f32 %v820, %v892
    %v894 = vpop.f32.mrf.mxu0
    %895 = vmatprep.mubr.f32.mxu0 %v710
    %896 = vmatmul.mubr.f32.gmra.mxu0 %v698
    %v897 = vpop.f32.mrf.mxu0
    %v898 = vadd.f32 %v820, %v897
    %v899 = vpop.f32.mrf.mxu0
    %900 = vmatprep.mubr.f32.mxu0 %v711
    %901 = vmatmul.mubr.f32.gmra.mxu0 %v699
    %v902 = vpop.f32.mrf.mxu0
    %v903 = vadd.f32 %v820, %v902
    %v904 = vpop.f32.mrf.mxu0
    %905 = vdwg.mxu0
    %906 = vmatprep.subr.mxu0 0.0
    %907 = vmatpush1.msra.mxu0 %v783
    %908 = vmatprep.subr.mxu0 0.0
    %909 = vmatpush1.msra.mxu0 %v782
    %910 = vmatprep.subr.mxu0 0.0
    %911 = vmatpush1.msra.mxu0 %v781
    %912 = vmatprep.subr.mxu0 0.0
    %913 = vmatpush1.msra.mxu0 %v780
    %914 = vmatprep.subr.mxu0 0.0
    %915 = vmatpush1.msra.mxu0 %v779
    %916 = vmatprep.subr.mxu0 0.0
    %917 = vmatpush1.msra.mxu0 %v778
    %918 = vmatprep.subr.mxu0 0.0
    %919 = vmatpush1.msra.mxu0 %v777
    %920 = vmatprep.subr.mxu0 0.0
    %921 = vmatpush1.msra.mxu0 %v776
    %922 = vmatprep.subr.mxu0 0.0
    %923 = vmatpush1.msra.mxu0 %v775
    %924 = vmatprep.subr.mxu0 0.0
    %925 = vmatpush1.msra.mxu0 %v774
    %926 = vmatprep.subr.mxu0 0.0
    %927 = vmatpush1.msra.mxu0 %v773
    %928 = vmatprep.subr.mxu0 0.0
    %929 = vmatpush1.msra.mxu0 %v772
    %930 = vmatprep.subr.mxu0 0.0
    %931 = vmatpush1.msra.mxu0 %v771
    %932 = vmatprep.subr.mxu0 0.0
    %933 = vmatpush1.msra.mxu0 %v770
    %934 = vmatprep.subr.mxu0 0.0
    %935 = vmatpush1.msra.mxu0 %v769
    %936 = vmatprep.subr.mxu0 0.0
    %937 = vmatpush1.msra.mxu0 %v768
    %938 = vmatprep.subr.mxu0 0.0
    %939 = vmatpush2.msra.mxu0 %v799
    %940 = vmatprep.subr.mxu0 0.0
    %941 = vmatpush2.msra.mxu0 %v798
    %942 = vmatprep.subr.mxu0 0.0
    %943 = vmatpush2.msra.mxu0 %v797
    %944 = vmatprep.subr.mxu0 0.0
    %945 = vmatpush2.msra.mxu0 %v796
    %946 = vmatprep.subr.mxu0 0.0
    %947 = vmatpush2.msra.mxu0 %v795
    %948 = vmatprep.subr.mxu0 0.0
    %949 = vmatpush2.msra.mxu0 %v794
    %950 = vmatprep.subr.mxu0 0.0
    %951 = vmatpush2.msra.mxu0 %v793
    %952 = vmatprep.subr.mxu0 0.0
    %953 = vmatpush2.msra.mxu0 %v792
    %954 = vmatprep.subr.mxu0 0.0
    %955 = vmatpush2.msra.mxu0 %v791
    %956 = vmatprep.subr.mxu0 0.0
    %957 = vmatpush2.msra.mxu0 %v790
    %958 = vmatprep.subr.mxu0 0.0
    %959 = vmatpush2.msra.mxu0 %v789
    %960 = vmatprep.subr.mxu0 0.0
    %961 = vmatpush2.msra.mxu0 %v788
    %962 = vmatprep.subr.mxu0 0.0
    %963 = vmatpush2.msra.mxu0 %v787
    %964 = vmatprep.subr.mxu0 0.0
    %965 = vmatpush2.msra.mxu0 %v786
    %966 = vmatprep.subr.mxu0 0.0
    %967 = vmatpush2.msra.mxu0 %v785
    %968 = vmatprep.subr.mxu0 0.0
    %969 = vmatpush2.msra.mxu0 %v784
    %970 = vmatprep.mubr.f32.mxu0 %v732
    %971 = vmatmul.mubr.f32.gmra.mxu0 %v720
    %v972 = vpop.f32.mrf.mxu0
    %v973 = vadd.f32 %v888, %v972
    %v974 = vpop.f32.mrf.mxu0
    %975 = vmatprep.mubr.f32.mxu0 %v733
    %976 = vmatmul.mubr.f32.gmra.mxu0 %v721
    %v977 = vpop.f32.mrf.mxu0
    %v978 = vadd.f32 %v893, %v977
    %v979 = vpop.f32.mrf.mxu0
    %980 = vmatprep.mubr.f32.mxu0 %v734
    %981 = vmatmul.mubr.f32.gmra.mxu0 %v722
    %v982 = vpop.f32.mrf.mxu0
    %v983 = vadd.f32 %v898, %v982
    %v984 = vpop.f32.mrf.mxu0
    %985 = vmatprep.mubr.f32.mxu0 %v735
    %986 = vmatmul.mubr.f32.gmra.mxu0 %v723
    %v987 = vpop.f32.mrf.mxu0
    %v988 = vadd.f32 %v903, %v987
    %v989 = vpop.f32.mrf.mxu0
    %990 = vdwg.mxu0
    %991 = vmatprep.subr.mxu0 0.0
    %992 = vmatpush1.msra.mxu0 %v815
    %993 = vmatprep.subr.mxu0 0.0
    %994 = vmatpush1.msra.mxu0 %v814
    %995 = vmatprep.subr.mxu0 0.0
    %996 = vmatpush1.msra.mxu0 %v813
    %997 = vmatprep.subr.mxu0 0.0
    %998 = vmatpush1.msra.mxu0 %v812
    %999 = vmatprep.subr.mxu0 0.0
    %1000 = vmatpush1.msra.mxu0 %v811
    %1001 = vmatprep.subr.mxu0 0.0
    %1002 = vmatpush1.msra.mxu0 %v810
    %1003 = vmatprep.subr.mxu0 0.0
    %1004 = vmatpush1.msra.mxu0 %v809
    %1005 = vmatprep.subr.mxu0 0.0
    %1006 = vmatpush1.msra.mxu0 %v808
    %1007 = vmatprep.subr.mxu0 0.0
    %1008 = vmatpush1.msra.mxu0 %v807
    %1009 = vmatprep.subr.mxu0 0.0
    %1010 = vmatpush1.msra.mxu0 %v806
    %1011 = vmatprep.subr.mxu0 0.0
    %1012 = vmatpush1.msra.mxu0 %v805
    %1013 = vmatprep.subr.mxu0 0.0
    %1014 = vmatpush1.msra.mxu0 %v804
    %1015 = vmatprep.subr.mxu0 0.0
    %1016 = vmatpush1.msra.mxu0 %v803
    %1017 = vmatprep.subr.mxu0 0.0
    %1018 = vmatpush1.msra.mxu0 %v802
    %1019 = vmatprep.subr.mxu0 0.0
    %1020 = vmatpush1.msra.mxu0 %v801
    %1021 = vmatprep.subr.mxu0 0.0
    %1022 = vmatpush1.msra.mxu0 %v800
    %1023 = vmatprep.subr.mxu0 0.0
    %1024 = vmatpush2.msra.mxu0 0.0
    %1025 = vmatprep.subr.mxu0 0.0
    %1026 = vmatpush2.msra.mxu0 0.0
    %1027 = vmatprep.subr.mxu0 0.0
    %1028 = vmatpush2.msra.mxu0 0.0
    %1029 = vmatprep.subr.mxu0 0.0
    %1030 = vmatpush2.msra.mxu0 0.0
    %1031 = vmatprep.subr.mxu0 0.0
    %1032 = vmatpush2.msra.mxu0 0.0
    %1033 = vmatprep.subr.mxu0 0.0
    %1034 = vmatpush2.msra.mxu0 0.0
    %1035 = vmatprep.subr.mxu0 0.0
    %1036 = vmatpush2.msra.mxu0 0.0
    %1037 = vmatprep.subr.mxu0 0.0
    %1038 = vmatpush2.msra.mxu0 0.0
    %1039 = vmatprep.subr.mxu0 0.0
    %1040 = vmatpush2.msra.mxu0 0.0
    %1041 = vmatprep.subr.mxu0 0.0
    %1042 = vmatpush2.msra.mxu0 0.0
    %1043 = vmatprep.subr.mxu0 0.0
    %1044 = vmatpush2.msra.mxu0 0.0
    %1045 = vmatprep.subr.mxu0 0.0
    %1046 = vmatpush2.msra.mxu0 0.0
    %1047 = vmatprep.subr.mxu0 0.0
    %1048 = vmatpush2.msra.mxu0 0.0
    %1049 = vmatprep.subr.mxu0 0.0
    %1050 = vmatpush2.msra.mxu0 0.0
    %1051 = vmatprep.subr.mxu0 0.0
    %1052 = vmatpush2.msra.mxu0 0.0
    %1053 = vmatprep.subr.mxu0 0.0
    %1054 = vmatpush2.msra.mxu0 0.0
    %1055 = vmatprep.mubr.f32.mxu0 0.0
    %1056 = vmatmul.mubr.f32.gmra.mxu0 %v684
    %v1057 = vpop.f32.mrf.mxu0
    %v1058 = vadd.f32 %v973, %v1057
    %v1059 = vpop.f32.mrf.mxu0
    %1060 = vmatprep.mubr.f32.mxu0 0.0
    %1061 = vmatmul.mubr.f32.gmra.mxu0 %v685
    %v1062 = vpop.f32.mrf.mxu0
    %v1063 = vadd.f32 %v978, %v1062
    %v1064 = vpop.f32.mrf.mxu0
    %1065 = vmatprep.mubr.f32.mxu0 0.0
    %1066 = vmatmul.mubr.f32.gmra.mxu0 %v686
    %v1067 = vpop.f32.mrf.mxu0
    %v1068 = vadd.f32 %v983, %v1067
    %v1069 = vpop.f32.mrf.mxu0
    %1070 = vmatprep.mubr.f32.mxu0 0.0
    %1071 = vmatmul.mubr.f32.gmra.mxu0 %v687
    %v1072 = vpop.f32.mrf.mxu0
    %v1073 = vadd.f32 %v988, %v1072
    %v1074 = vpop.f32.mrf.mxu0
    %1075 = vdwg.mxu0
    %v1076 = vsel %vm523, %v1058, -1e+30
    %v1077 = vsel %vm524, %v1063, -1e+30
    %v1078 = vsel %vm525, %v1068, -1e+30
    %v1079 = vsel %vm526, %v1073, -1e+30
    %v1080 = vrot.slane %v1076, 7
    %v1081 = vrot.slane %v1077, 7
    %v1082 = vrot.slane %v1078, 7
    %v1083 = vrot.slane %v1079, 7
    %v1084 = vsel %vm287, %v1082, %v1083
    %v1085 = vsel %vm287, %v1081, %v1082
    %v1086 = vsel %vm287, %v1080, %v1081
    %v1087 = vsel %vm287, %v1083, %v1080
    %v1088 = vsel %vm292, %v1087, -1e+30
    %v1089 = vsel %vm293, %v1086, -1e+30
    %v1090 = vsel %vm294, %v1085, -1e+30
    %v1091 = vsel %vm295, %v1084, -1e+30
    %v1092 = vmax.f32 %v1088, -1e+30
    %v1093 = vmax.f32 %v1089, -1e+30
    %v1094 = vmax.f32 %v1090, -1e+30
    %v1095 = vmax.f32 %v1091, -1e+30
    %v1096 = vrot.slane %v1076, 6
    %v1097 = vrot.slane %v1077, 6
    %v1098 = vrot.slane %v1078, 6
    %v1099 = vrot.slane %v1079, 6
    %v1100 = vsel %vm270, %v1098, %v1099
    %v1101 = vsel %vm270, %v1097, %v1098
    %v1102 = vsel %vm270, %v1096, %v1097
    %v1103 = vsel %vm270, %v1099, %v1096
    %v1104 = vsel %vm275, %v1103, -1e+30
    %v1105 = vsel %vm276, %v1102, -1e+30
    %v1106 = vsel %vm277, %v1101, -1e+30
    %v1107 = vsel %vm278, %v1100, -1e+30
    %v1108 = vmax.f32 %v1092, %v1104
    %v1109 = vmax.f32 %v1093, %v1105
    %v1110 = vmax.f32 %v1094, %v1106
    %v1111 = vmax.f32 %v1095, %v1107
    %v1112 = vrot.slane %v1076, 5
    %v1113 = vrot.slane %v1077, 5
    %v1114 = vrot.slane %v1078, 5
    %v1115 = vrot.slane %v1079, 5
    %v1116 = vsel %vm567, %v1114, %v1115
    %v1117 = vsel %vm567, %v1113, %v1114
    %v1118 = vsel %vm567, %v1112, %v1113
    %v1119 = vsel %vm567, %v1115, %v1112
    %v1120 = vsel %vm572, %v1119, -1e+30
    %v1121 = vsel %vm573, %v1118, -1e+30
    %v1122 = vsel %vm574, %v1117, -1e+30
    %v1123 = vsel %vm575, %v1116, -1e+30
    %v1124 = vmax.f32 %v1108, %v1120
    %v1125 = vmax.f32 %v1109, %v1121
    %v1126 = vmax.f32 %v1110, %v1122
    %v1127 = vmax.f32 %v1111, %v1123
    %v1128 = vrot.slane %v1076, 4
    %v1129 = vrot.slane %v1077, 4
    %v1130 = vrot.slane %v1078, 4
    %v1131 = vrot.slane %v1079, 4
    %v1132 = vsel %vm588, %v1130, %v1131
    %v1133 = vsel %vm588, %v1129, %v1130
    %v1134 = vsel %vm588, %v1128, %v1129
    %v1135 = vsel %vm588, %v1131, %v1128
    %v1136 = vsel %vm593, %v1135, -1e+30
    %v1137 = vsel %vm594, %v1134, -1e+30
    %v1138 = vsel %vm595, %v1133, -1e+30
    %v1139 = vsel %vm596, %v1132, -1e+30
    %v1140 = vmax.f32 %v1124, %v1136
    %v1141 = vmax.f32 %v1125, %v1137
    %v1142 = vmax.f32 %v1126, %v1138
    %v1143 = vmax.f32 %v1127, %v1139
    %v1144 = vsel %vm605, 0.0, %v1140
    %v1145 = vsel %vm606, 0.0, %v1141
    %v1146 = vsel %vm607, 0.0, %v1142
    %v1147 = vsel %vm608, 0.0, %v1143
    %1148 = vadd.xlane.f32.xlu0 %v1144
    %v1149 = vpop.xlane.xlu0 %1148
    %1150 = vadd.xlane.f32.xlu0 %v1145
    %v1151 = vpop.xlane.xlu0 %1150
    %1152 = vadd.xlane.f32.xlu0 %v1146
    %v1153 = vpop.xlane.xlu0 %1152
    %1154 = vadd.xlane.f32.xlu0 %v1147
    %v1155 = vpop.xlane.xlu0 %1154
    %v1156 = vmul.f32 %v1149, %v621
    %v1157 = vmul.f32 %v1151, %v621
    %v1158 = vmul.f32 %v1153, %v621
    %v1159 = vmul.f32 %v1155, %v621
    %v1160 = vsub.f32 %v1144, %v1156
    %v1161 = vsub.f32 %v1145, %v1157
    %v1162 = vsub.f32 %v1146, %v1158
    %v1163 = vsub.f32 %v1147, %v1159
    %v1164 = vmul.f32 %v1160, %v1160
    %v1165 = vmul.f32 %v1161, %v1161
    %v1166 = vmul.f32 %v1162, %v1162
    %v1167 = vmul.f32 %v1163, %v1163
    %1168 = vadd.xlane.f32.xlu0 %v1164
    %v1169 = vpop.xlane.xlu0 %1168
    %1170 = vadd.xlane.f32.xlu0 %v1165
    %v1171 = vpop.xlane.xlu0 %1170
    %1172 = vadd.xlane.f32.xlu0 %v1166
    %v1173 = vpop.xlane.xlu0 %1172
    %1174 = vadd.xlane.f32.xlu0 %v1167
    %v1175 = vpop.xlane.xlu0 %1174
    %v1176 = vmul.f32 %v1169, %v621
    %v1177 = vmul.f32 %v1171, %v621
    %v1178 = vmul.f32 %v1173, %v621
    %v1179 = vmul.f32 %v1175, %v621
    %v1180 = vadd.f32 %v1176, 1e-05
    %v1181 = vadd.f32 %v1177, 1e-05
    %v1182 = vadd.f32 %v1178, 1e-05
    %v1183 = vadd.f32 %v1179, 1e-05
    %v1184 = vrsqrt.pop %v1180
    %v1185 = vrsqrt.pop %v1181
    %v1186 = vrsqrt.pop %v1182
    %v1187 = vrsqrt.pop %v1183
    %v1188 = vmul.f32 %v1160, %v1184
    %v1189 = vmul.f32 %v1161, %v1185
    %v1190 = vmul.f32 %v1162, %v1186
    %v1191 = vmul.f32 %v1163, %v1187
    %v1192 = vld [vmem:[%s6 + $0x1] sm:$0x1]
    %v1193 = vlaneseq
    %v1194 = vshrl.u32 %v1193, 7
    %v1195 = vsub.s32 0, %v1194
    %v1196 = vrot.slane %v1192, %v1195
    %v1197 = vmul.f32 %v1188, %v1196
    %v1198 = vmul.f32 %v1189, %v1196
    %v1199 = vmul.f32 %v1190, %v1196
    %v1200 = vmul.f32 %v1191, %v1196
    %v1201 = vld [vmem:[%s6 + $0x2] sm:$0x1]
    %v1202 = vlaneseq
    %v1203 = vshrl.u32 %v1202, 7
    %v1204 = vsub.s32 0, %v1203
    %v1205 = vrot.slane %v1201, %v1204
    %v1206 = vadd.f32 %v1197, %v1205
    %v1207 = vadd.f32 %v1198, %v1205
    %v1208 = vadd.f32 %v1199, %v1205
    %v1209 = vadd.f32 %v1200, %v1205
    %vm1210 = vcmp.gt.f32.partialorder %v1206, 0.0
    %vm1211 = vcmp.gt.f32.partialorder %v1207, 0.0
    %vm1212 = vcmp.gt.f32.partialorder %v1208, 0.0
    %vm1213 = vcmp.gt.f32.partialorder %v1209, 0.0
    %v1214 = vmul.f32 %v1206, 0.01
    %v1215 = vmul.f32 %v1207, 0.01
    %v1216 = vmul.f32 %v1208, 0.01
    %v1217 = vmul.f32 %v1209, 0.01
    %v1218 = vsel %vm1210, %v1206, %v1214
    %v1219 = vsel %vm1211, %v1207, %v1215
    %v1220 = vsel %vm1212, %v1208, %v1216
    %v1221 = vsel %vm1213, %v1209, %v1217
    %v1222 = vld [vmem:[#allocation10] sm:$0xff]
    %v1223 = vld [vmem:[#allocation10 + $0x8] sm:$0xff]
    %v1224 = vld [vmem:[#allocation10 + $0x10] sm:$0xff]
    %v1225 = vld [vmem:[#allocation10 + $0x18] sm:$0xff]
    %v1226 = vld [vmem:[#allocation10 + $0x20] sm:$0xff]
    %v1227 = vld [vmem:[#allocation10 + $0x28] sm:$0xff]
    %v1228 = vld [vmem:[#allocation10 + $0x30] sm:$0xff]
    %v1229 = vld [vmem:[#allocation10 + $0x38] sm:$0xff]
    %v1230 = vld [vmem:[#allocation10 + $0x40] sm:$0xff]
    %v1231 = vld [vmem:[#allocation10 + $0x48] sm:$0xff]
    %v1232 = vld [vmem:[#allocation10 + $0x50] sm:$0xff]
    %v1233 = vld [vmem:[#allocation10 + $0x58] sm:$0xff]
    %v1234 = vld [vmem:[#allocation10 + $0x60] sm:$0xff]
    %v1235 = vld [vmem:[#allocation10 + $0x68] sm:$0xff]
    %v1236 = vld [vmem:[#allocation10 + $0x70] sm:$0xff]
    %v1237 = vld [vmem:[#allocation10 + $0x78] sm:$0xff]
    %v1238 = vld [vmem:[#allocation10 + $0x80] sm:$0xff]
    %v1239 = vld [vmem:[#allocation10 + $0x88] sm:$0xff]
    %v1240 = vld [vmem:[#allocation10 + $0x90] sm:$0xff]
    %v1241 = vld [vmem:[#allocation10 + $0x98] sm:$0xff]
    %v1242 = vld [vmem:[#allocation10 + $0xa0] sm:$0xff]
    %v1243 = vld [vmem:[#allocation10 + $0xa8] sm:$0xff]
    %v1244 = vld [vmem:[#allocation10 + $0xb0] sm:$0xff]
    %v1245 = vld [vmem:[#allocation10 + $0xb8] sm:$0xff]
    %v1246 = vld [vmem:[#allocation10 + $0xc0] sm:$0xff]
    %v1247 = vld [vmem:[#allocation10 + $0xc8] sm:$0xff]
    %v1248 = vld [vmem:[#allocation10 + $0xd0] sm:$0xff]
    %v1249 = vld [vmem:[#allocation10 + $0xd8] sm:$0xff]
    %v1250 = vld [vmem:[#allocation10 + $0xe0] sm:$0xff]
    %v1251 = vld [vmem:[#allocation10 + $0xe8] sm:$0xff]
    %v1252 = vld [vmem:[#allocation10 + $0xf0] sm:$0xff]
    %v1253 = vld [vmem:[#allocation10 + $0xf8] sm:$0xff]
    %v1254 = vld [vmem:[%s8] sm:$0x1]
    %v1256 = vlaneseq
    %v1257 = vshrl.u32 %v1256, 7
    %v1258 = vsub.s32 0, %v1257
    %v1259 = vrot.slane %v1254, %v1258
    %1261 = vmatprep.subr.mxu0 0.0
    %1262 = vmatpush1.msra.mxu0 %v1237
    %1263 = vmatprep.subr.mxu0 0.0
    %1264 = vmatpush1.msra.mxu0 %v1236
    %1265 = vmatprep.subr.mxu0 0.0
    %1266 = vmatpush1.msra.mxu0 %v1235
    %1267 = vmatprep.subr.mxu0 0.0
    %1268 = vmatpush1.msra.mxu0 %v1234
    %1269 = vmatprep.subr.mxu0 0.0
    %1270 = vmatpush1.msra.mxu0 %v1233
    %1271 = vmatprep.subr.mxu0 0.0
    %1272 = vmatpush1.msra.mxu0 %v1232
    %1273 = vmatprep.subr.mxu0 0.0
    %1274 = vmatpush1.msra.mxu0 %v1231
    %1275 = vmatprep.subr.mxu0 0.0
    %1276 = vmatpush1.msra.mxu0 %v1230
    %1277 = vmatprep.subr.mxu0 0.0
    %1278 = vmatpush1.msra.mxu0 %v1229
    %1279 = vmatprep.subr.mxu0 0.0
    %1280 = vmatpush1.msra.mxu0 %v1228
    %1281 = vmatprep.subr.mxu0 0.0
    %1282 = vmatpush1.msra.mxu0 %v1227
    %1283 = vmatprep.subr.mxu0 0.0
    %1284 = vmatpush1.msra.mxu0 %v1226
    %1285 = vmatprep.subr.mxu0 0.0
    %1286 = vmatpush1.msra.mxu0 %v1225
    %1287 = vmatprep.subr.mxu0 0.0
    %1288 = vmatpush1.msra.mxu0 %v1224
    %1289 = vmatprep.subr.mxu0 0.0
    %1290 = vmatpush1.msra.mxu0 %v1223
    %1291 = vmatprep.subr.mxu0 0.0
    %1292 = vmatpush1.msra.mxu0 %v1222
    %1293 = vmatprep.subr.mxu0 0.0
    %1294 = vmatpush2.msra.mxu0 %v1253
    %1295 = vmatprep.subr.mxu0 0.0
    %1296 = vmatpush2.msra.mxu0 %v1252
    %1297 = vmatprep.subr.mxu0 0.0
    %1298 = vmatpush2.msra.mxu0 %v1251
    %1299 = vmatprep.subr.mxu0 0.0
    %1300 = vmatpush2.msra.mxu0 %v1250
    %1301 = vmatprep.subr.mxu0 0.0
    %1302 = vmatpush2.msra.mxu0 %v1249
    %1303 = vmatprep.subr.mxu0 0.0
    %1304 = vmatpush2.msra.mxu0 %v1248
    %1305 = vmatprep.subr.mxu0 0.0
    %1306 = vmatpush2.msra.mxu0 %v1247
    %1307 = vmatprep.subr.mxu0 0.0
    %1308 = vmatpush2.msra.mxu0 %v1246
    %1309 = vmatprep.subr.mxu0 0.0
    %1310 = vmatpush2.msra.mxu0 %v1245
    %1311 = vmatprep.subr.mxu0 0.0
    %1312 = vmatpush2.msra.mxu0 %v1244
    %1313 = vmatprep.subr.mxu0 0.0
    %1314 = vmatpush2.msra.mxu0 %v1243
    %1315 = vmatprep.subr.mxu0 0.0
    %1316 = vmatpush2.msra.mxu0 %v1242
    %1317 = vmatprep.subr.mxu0 0.0
    %1318 = vmatpush2.msra.mxu0 %v1241
    %1319 = vmatprep.subr.mxu0 0.0
    %1320 = vmatpush2.msra.mxu0 %v1240
    %1321 = vmatprep.subr.mxu0 0.0
    %1322 = vmatpush2.msra.mxu0 %v1239
    %1323 = vmatprep.subr.mxu0 0.0
    %1324 = vmatpush2.msra.mxu0 %v1238
    %1325 = vmatprep.mubr.f32.mxu0 %v101
    %1326 = vmatmul.mubr.f32.gmra.mxu0 %v1218
    %v1327 = vpop.f32.mrf.mxu0
    %v1328 = vadd.f32 %v1259, %v1327
    %v1329 = vpop.f32.mrf.mxu0
    %1330 = vmatprep.mubr.f32.mxu0 %v102
    %1331 = vmatmul.mubr.f32.gmra.mxu0 %v1219
    %v1332 = vpop.f32.mrf.mxu0
    %v1333 = vadd.f32 %v1259, %v1332
    %v1334 = vpop.f32.mrf.mxu0
    %1335 = vmatprep.mubr.f32.mxu0 %v103
    %1336 = vmatmul.mubr.f32.gmra.mxu0 %v1220
    %v1337 = vpop.f32.mrf.mxu0
    %v1338 = vadd.f32 %v1259, %v1337
    %v1339 = vpop.f32.mrf.mxu0
    %1340 = vmatprep.mubr.f32.mxu0 %v104
    %1341 = vmatmul.mubr.f32.gmra.mxu0 %v1221
    %v1342 = vpop.f32.mrf.mxu0
    %v1343 = vadd.f32 %v1259, %v1342
    %v1344 = vpop.f32.mrf.mxu0
    %1345 = vdwg.mxu0
    %v1346 = vadd.f32 %v1328, %v101
    %v1347 = vadd.f32 %v1333, %v102
    %v1348 = vadd.f32 %v1338, %v103
    %v1349 = vadd.f32 %v1343, %v104
    %1350 = vst [vmem:[#allocation11] sm:$0xff] %v1346
    %1351 = vst [vmem:[#allocation11 + $0x8] sm:$0xff] %v1347
    %1352 = vst [vmem:[#allocation11 + $0x10] sm:$0xff] %v1348
    %1353 = vst [vmem:[#allocation11 + $0x18] sm:$0xff] %v1349
    // Predicated region
    $region58: #{tpu_custom_call.1} parent=1 // pred_check
      _
    $region59: #{tpu_custom_call.1} parent=1 // pred_check_branch
      %1355 = sbr.rel (0) target = $region61
    $region60: #{tpu_custom_call.1} parent=1 // pred_region
      %s1357 = ssub.s32 512, 512
      %1358 = vsyncadd [#allocation4], %s1357
      %s1359 = sshll.u32 [#allocation11], 4
      %s1360 = int_to_ptr.vmem [resolvable:$true] %s1359
      %1365 = dma.vmem_to_hbm [thread:$0]  %s1360, 512, %s9, [#allocation4], 128, 128, 8
    $region61: #{tpu_custom_call.1} parent=1 // pred_fallthru
      _
    // Predicated region
    $region62: #{tpu_custom_call.1} parent=1 // pred_check
      _
    $region63: #{tpu_custom_call.1} parent=1 // pred_check_branch
      %1367 = sbr.rel (0) target = $region65
    $region64: #{tpu_custom_call.1} parent=1 // pred_region
      %1368 = dma.done [#allocation4], 512
    $region65: #{tpu_custom_call.1} parent=1 // pred_fallthru
      _
    %1369 = vsyncpa [#allocation3], 1
    %1370 = vsyncpa [#allocation6], 1
    %1371 = vsyncpa [#allocation9], 1
    %1372 = vsyncpa [#allocation4], 1

</llo_original>
